<compile_context>
chip_gen: v5e
topology: v5e:2x2
jax: 0.10.0
libtpu: 0.0.40
codegen_flags: <defaults>
</compile_context>

<pallas_src>
import functools

import jax
import jax.numpy as jnp
from jax import lax
from jax.experimental import pallas as pl
from jax.experimental.pallas import tpu as pltpu

IN_DIM = 118
HID9 = 10          # fc9 output width == dropout-mask width
LANES = 128


def _round_up(a, m):
    return (a + m - 1) // m * m


def _layer_dims(z_dim, n_lmm):
    return [(IN_DIM, 60), (60, 30), (30, 10), (10, z_dim),
            (z_dim, 10), (10, 30), (30, 60), (60, IN_DIM),
            (z_dim + 2, 10), (10, n_lmm)]


# ----------------------------------------------------------------------------
# kernel
# ----------------------------------------------------------------------------
def _dalmm_kernel(in_ref, p_ref, out_ref, *, offs, z_dim, n_lmm):
    f32 = jnp.float32
    xin = in_ref[...]                                   # (B, 128) f32 fused slab
    x = xin[:, 0:IN_DIM]                                # (B, 118)
    drop = xin[:, IN_DIM:IN_DIM + HID9]                 # (B, 10) keep * 2 mask

    def wslice(i):
        w_off, r, c, b_off = offs[i]
        return p_ref[w_off:w_off + r, 0:c], p_ref[b_off:b_off + 1, 0:c]

    def dense(h, i, act=True):
        w, b = wslice(i)                                # bf16 slab slices
        y = jnp.dot(h.astype(w.dtype), w, preferred_element_type=f32)
        y = y + b.astype(f32)
        return jnp.tanh(y) if act else y

    # ------------------------------- encode -------------------------------
    h = dense(x, 0)                                     # (B, 60)
    h = dense(h, 1)                                     # (B, 30)
    h = dense(h, 2)                                     # (B, 10)

    # fc4: 10 -> z_dim (weight stored transposed (z_dim, 10)); VPU path for
    # z_dim == 1 avoids a degenerate N=1 MXU matmul.
    w4_off, _, _, b4_off = offs[3]
    w4t = p_ref[w4_off:w4_off + z_dim, 0:10]
    b4 = p_ref[b4_off:b4_off + 1, 0:z_dim].astype(f32)
    if z_dim == 1:
        z_c = jnp.sum(h * w4t.astype(f32), axis=1, keepdims=True) + b4
    else:
        z_c = lax.dot_general(h.astype(w4t.dtype), w4t,
                              (((1,), (1,)), ((), ())),
                              preferred_element_type=f32) + b4

    # ------------------------------- decode -------------------------------
    # fc5: z_dim -> 10; K=1 matmul replaced by a broadcast multiply.
    w5, b5 = wslice(4)                                  # (z_dim, 10)
    if z_dim == 1:
        h = jnp.tanh(z_c * w5.astype(f32) + b5.astype(f32))
    else:
        h = jnp.tanh(jnp.dot(z_c.astype(w5.dtype), w5,
                             preferred_element_type=f32) + b5.astype(f32))

    h = dense(h, 5)                                     # (B, 30)
    h = dense(h, 6)                                     # (B, 60)
    x_hat = dense(h, 7, act=False)                      # (B, 118) f32

    # ----------------------- reconstruction features -----------------------
    xx = jnp.sum(x * x, axis=1, keepdims=True)
    hh = jnp.sum(x_hat * x_hat, axis=1, keepdims=True)
    xh = jnp.sum(x * x_hat, axis=1, keepdims=True)
    dd = jnp.maximum(xx + hh - 2.0 * xh, 0.0)           # ||x - x_hat||^2, clamped
    eps2 = jnp.float32(1e-8 * 1e-8)                     # torch cosine eps = 1e-8
    # NOTE: like torch, an all-zero input row gives 0/0 -> NaN rel_euc (only
    # padded rows here; they are sliced off in the wrapper).
    rel_euc = jnp.sqrt(dd) * lax.rsqrt(xx)
    cos_sim = xh * lax.rsqrt(jnp.maximum(xx, eps2)) * lax.rsqrt(jnp.maximum(hh, eps2))

    # ------------------------------- estimate -------------------------------
    # fc9: (z_dim + 2) -> 10 decomposed per input column; no concat, no MXU.
    w9_off, _, _, b9_off = offs[8]
    w9 = p_ref[w9_off:w9_off + z_dim + 2, 0:10].astype(f32)
    b9 = p_ref[b9_off:b9_off + 1, 0:10].astype(f32)
    if z_dim == 1:
        acc9 = z_c * w9[0:1, :]
    else:
        acc9 = jnp.dot(z_c, w9[0:z_dim, :], preferred_element_type=f32)
    acc9 = acc9 + rel_euc * w9[z_dim:z_dim + 1, :]
    acc9 = acc9 + cos_sim * w9[z_dim + 1:z_dim + 2, :]
    h9 = jnp.tanh(acc9 + b9) * drop                     # dropout(p=0.5), training

    # fc10: 10 -> n_lmm (weight stored transposed (n_lmm, 10)).  Small n_lmm:
    # per-output-column broadcast MAC + lane reduce, no MXU weight push.
    w10_off, _, _, b10_off = offs[9]
    w10t = p_ref[w10_off:w10_off + n_lmm, 0:10].astype(f32)
    b10 = p_ref[b10_off:b10_off + 1, 0:n_lmm].astype(f32)
    if n_lmm <= 8:
        logits = [jnp.sum(h9 * w10t[j:j + 1, :], axis=1, keepdims=True)
                  + b10[:, j:j + 1] for j in range(n_lmm)]
        mx = logits[0]
        for col in logits[1:]:
            mx = jnp.maximum(mx, col)
        exps = [jnp.exp(col - mx) for col in logits]
        s = exps[0]
        for e in exps[1:]:
            s = s + e
        inv = pl.reciprocal(s, approx=True)
        gamma = jnp.concatenate([e * inv for e in exps], axis=1)
    else:
        lg = lax.dot_general(h9, w10t, (((1,), (1,)), ((), ())),
                             preferred_element_type=f32) + b10
        mx = jnp.max(lg, axis=1, keepdims=True)
        e = jnp.exp(lg - mx)
        gamma = e * pl.reciprocal(jnp.sum(e, axis=1, keepdims=True), approx=True)

    # ----------------- single lane-dense register-assembled store -----------------
    width = IN_DIM + z_dim + 2 + n_lmm
    pieces = [x_hat, z_c, rel_euc, cos_sim, gamma]
    pad = out_ref.shape[1] - width
    if pad:
        pieces.append(jnp.zeros((xin.shape[0], pad), f32))
    out_ref[...] = jnp.concatenate(pieces, axis=1)


# ----------------------------------------------------------------------------
# parameter packing: one lane-padded (rows, 128) slab, tile-aligned per tensor
# ----------------------------------------------------------------------------
def pack_params(params, dtype=jnp.bfloat16):
    """fc4/fc10 weights are stored transposed so their rows broadcast on the VPU.
    Returns (slab, offsets) with offsets = (weight_row, rows, cols, bias_row)."""
    itemsize = jnp.dtype(dtype).itemsize
    align = 8 * (4 // itemsize)            # 8 rows for f32, 16 for bf16
    mats = []
    for i, (w, b) in enumerate(params):
        m = w.T if i in (3, 9) else w
        mats.append((jnp.asarray(m, jnp.float32),
                     jnp.asarray(b, jnp.float32).reshape(1, -1)))
    offs = []
    rows = 0
    for m, _ in mats:
        r, c = m.shape
        r_pad = _round_up(r, align)
        offs.append((rows, r, c, rows + r_pad))
        rows += r_pad + align              # `align` rows reserved for the bias
    rows = _round_up(rows, align)
    slab = jnp.zeros((rows, LANES), jnp.float32)
    for (m, b), (w_off, r, c, b_off) in zip(mats, offs):
        slab = slab.at[w_off:w_off + r, 0:c].set(m)
        slab = slab.at[b_off:b_off + 1, 0:b.shape[1]].set(b)
    return slab.astype(dtype), tuple(offs)


# ----------------------------------------------------------------------------
# wrapper
# ----------------------------------------------------------------------------
def dalmm_forward(x, params, dropout_key, z_dim=1, n_lmm=2, block_rows=1024):
    """Forward pass; returns (z_c, x_hat, z, gamma) like the torch module."""
    n = x.shape[0]
    x = jnp.asarray(x, jnp.float32)
    slab, offs = pack_params(params)
    p_rows = slab.shape[0]

    # Batch tile: 1024 rows by default (512 is plenty on v5e); per-step VMEM is
    # only a few MB so large tiles amortize per-step overhead and MXU weight
    # pushes.  Small batches run as one 8-row-aligned tile.
    block = block_rows if n >= block_rows else max(8, _round_up(n, 8))
    n_pad = _round_up(n, block)

    # Fused lane-dense input slab: x in lanes 0:118, dropout keep*2 in 118:128
    # (F.dropout(p=0.5, training=True) semantics, distinct per row).
    keep = jax.random.bernoulli(dropout_key, 0.5, (n_pad, HID9))
    in_slab = jnp.zeros((n_pad, LANES), jnp.float32)
    in_slab = in_slab.at[:n, 0:IN_DIM].set(x)
    in_slab = in_slab.at[:, IN_DIM:LANES].set(keep.astype(jnp.float32) * 2.0)

    out_w = _round_up(IN_DIM + z_dim + 2 + n_lmm, LANES)   # 128 for defaults

    dims = _layer_dims(z_dim, n_lmm)
    flops_per_row = 2 * sum(fi * fo for fi, fo in dims) + 10 * IN_DIM
    cost = pl.CostEstimate(
        flops=int(n_pad * flops_per_row),
        transcendentals=int(n_pad * (210 + n_lmm + 5)),
        bytes_accessed=int(n_pad * (LANES + out_w) * 4 + slab.size * 2),
    )

    kernel = functools.partial(_dalmm_kernel, offs=offs, z_dim=z_dim, n_lmm=n_lmm)

    def call(params_spec):
        return pl.pallas_call(
            kernel,
            grid=(n_pad // block,),
            in_specs=[
                pl.BlockSpec((block, LANES), lambda i: (i, 0)),   # fused x+mask tile
                params_spec,                                      # VMEM-resident params
            ],
            out_specs=pl.BlockSpec((block, out_w), lambda i: (i, 0)),
            out_shape=jax.ShapeDtypeStruct((n_pad, out_w), jnp.float32),
            compiler_params=pltpu.CompilerParams(
                # batch axis is independent -> "parallel" (sharded across TCs
                # where supported; no-op on single-TC v5e/v6e).
                dimension_semantics=("parallel",),
                vmem_limit_bytes=32 * 1024 * 1024,
            ),
            cost_estimate=cost,
        )(in_slab, slab)

    try:
        # Constant index_map -> single-buffer the param slab (frees one copy).
        out = call(pl.BlockSpec((p_rows, LANES), lambda i: (0, 0),
                                pipeline_mode=pl.Buffered(1)))
        jax.block_until_ready(out)
    except Exception:
        out = call(pl.BlockSpec((p_rows, LANES), lambda i: (0, 0)))

    x_hat = out[:n, :IN_DIM]
    z = out[:n, IN_DIM:IN_DIM + z_dim + 2]
    z_c = z[:, :z_dim]
    gamma = out[:n, IN_DIM + z_dim + 2:IN_DIM + z_dim + 2 + n_lmm]
    return z_c, x_hat, z, gamma


# ----------------------------------------------------------------------------
# deterministic nn.Linear-style init (U(-1/sqrt(fan_in), 1/sqrt(fan_in)))
# ----------------------------------------------------------------------------
def init_linear(key, fan_in, fan_out):
    kw, kb = jax.random.split(key)
    bound = 1.0 / float(fan_in) ** 0.5
    w = jax.random.uniform(kw, (fan_in, fan_out), jnp.float32, -bound, bound)
    b = jax.random.uniform(kb, (1, fan_out), jnp.float32, -bound, bound)
    return w, b


def make_params(key, z_dim=1, n_lmm=2):
    dims = _layer_dims(z_dim, n_lmm)
    keys = jax.random.split(key, len(dims))
    return [init_linear(k, fi, fo) for k, (fi, fo) in zip(keys, dims)]


if __name__ == "__main__":
    key = jax.random.PRNGKey(0)
    k_x, k_p, k_d = jax.random.split(key, 3)

    batch = 8
    x = jax.random.normal(k_x, (batch, IN_DIM), dtype=jnp.float32)
    params = make_params(k_p, z_dim=1, n_lmm=2)

    z_c, x_hat, z, gamma = dalmm_forward(x, params, dropout_key=k_d)
    jax.block_until_ready((z_c, x_hat, z, gamma))

    assert z_c.shape == (batch, 1)
    assert x_hat.shape == (batch, IN_DIM)
    assert z.shape == (batch, 3)
    assert gamma.shape == (batch, 2)
    assert bool(jnp.all(jnp.isfinite(x_hat)))
    assert bool(jnp.all(jnp.isfinite(z)))
    assert bool(jnp.all(jnp.isfinite(gamma)))
    assert bool(jnp.all(gamma >= 0.0))
    assert bool(jnp.allclose(jnp.sum(gamma, axis=1), 1.0, atol=1e-2))
    assert bool(jnp.allclose(z[:, :1], z_c))

    # Multi-grid-step smoke test (2 tiles of 32 rows).
    x2 = jax.random.normal(jax.random.PRNGKey(1), (64, IN_DIM), dtype=jnp.float32)
    z_c2, x_hat2, z2, gamma2 = dalmm_forward(x2, params, dropout_key=k_d,
                                             block_rows=32)
    jax.block_until_ready(gamma2)
    assert gamma2.shape == (64, 2)
    assert bool(jnp.all(jnp.isfinite(gamma2)))
    assert bool(jnp.allclose(jnp.sum(gamma2, axis=1), 1.0, atol=1e-2))

    print("KERNEL_OK")
</pallas_src>

<mosaic_0001>
module attributes {stable_mosaic.version = 11 : i64} {
  func.func @_dalmm_kernel(%arg0: i32, %arg1: memref<8x128xf32, #tpu.memory_space<vmem>>, %arg2: memref<560x128xbf16, #tpu.memory_space<vmem>>, %arg3: memref<8x128xf32, #tpu.memory_space<vmem>>) attributes {dimension_semantics = [#tpu.dimension_semantics<parallel>], iteration_bounds = array<i64: 1>, scalar_prefetch = 0 : i64, scratch_operands = 0 : i64, tpu.core_type = #tpu.core_type<tc>, window_params = [{transform_indices = @transform_0, window_bounds = array<i64: 8, 128>}, {pipeline_mode = #tpu.pipeline_mode<synchronous>, transform_indices = @transform_1, window_bounds = array<i64: 560, 128>}, {transform_indices = @transform_2, window_bounds = array<i64: 8, 128>}]} {
    %c0 = arith.constant 0 : index
    %c0_0 = arith.constant 0 : index
    %0 = vector.load %arg1[%c0, %c0_0] : memref<8x128xf32, #tpu.memory_space<vmem>>, vector<8x128xf32>
    %1 = vector.extract_strided_slice %0 {offsets = [0, 0], sizes = [8, 118], strides = [1, 1]} : vector<8x128xf32> to vector<8x118xf32>
    %2 = vector.extract_strided_slice %0 {offsets = [0, 118], sizes = [8, 10], strides = [1, 1]} : vector<8x128xf32> to vector<8x10xf32>
    %c0_1 = arith.constant 0 : index
    %c0_2 = arith.constant 0 : index
    %3 = vector.load %arg2[%c0_1, %c0_2] : memref<560x128xbf16, #tpu.memory_space<vmem>>, vector<118x60xbf16>
    %c128 = arith.constant 128 : index
    %c0_3 = arith.constant 0 : index
    %4 = vector.load %arg2[%c128, %c0_3] : memref<560x128xbf16, #tpu.memory_space<vmem>>, vector<1x60xbf16>
    %5 = arith.truncf %1 : vector<8x118xf32> to vector<8x118xbf16>
    %cst = arith.constant dense<0.000000e+00> : vector<8x60xf32>
    %6 = tpu.matmul %5, %3, %cst {dimension_numbers = #tpu.dot_dimension_numbers<[1], [0], [0], [1], [0, 0, 1, 1], [], []>} : vector<8x118xbf16>, vector<118x60xbf16>, vector<8x60xf32> -> vector<8x60xf32>
    %7 = arith.extf %4 : vector<1x60xbf16> to vector<1x60xf32>
    %8 = vector.broadcast %7 : vector<1x60xf32> to vector<8x60xf32>
    %9 = arith.addf %6, %8 : vector<8x60xf32>
    %10 = math.tanh %9 : vector<8x60xf32>
    %c144 = arith.constant 144 : index
    %c0_4 = arith.constant 0 : index
    %11 = vector.load %arg2[%c144, %c0_4] : memref<560x128xbf16, #tpu.memory_space<vmem>>, vector<60x30xbf16>
    %c208 = arith.constant 208 : index
    %c0_5 = arith.constant 0 : index
    %12 = vector.load %arg2[%c208, %c0_5] : memref<560x128xbf16, #tpu.memory_space<vmem>>, vector<1x30xbf16>
    %13 = arith.truncf %10 : vector<8x60xf32> to vector<8x60xbf16>
    %cst_6 = arith.constant dense<0.000000e+00> : vector<8x30xf32>
    %14 = tpu.matmul %13, %11, %cst_6 {dimension_numbers = #tpu.dot_dimension_numbers<[1], [0], [0], [1], [0, 0, 1, 1], [], []>} : vector<8x60xbf16>, vector<60x30xbf16>, vector<8x30xf32> -> vector<8x30xf32>
    %15 = arith.extf %12 : vector<1x30xbf16> to vector<1x30xf32>
    %16 = vector.broadcast %15 : vector<1x30xf32> to vector<8x30xf32>
    %17 = arith.addf %14, %16 : vector<8x30xf32>
    %18 = math.tanh %17 : vector<8x30xf32>
    %c224 = arith.constant 224 : index
    %c0_7 = arith.constant 0 : index
    %19 = vector.load %arg2[%c224, %c0_7] : memref<560x128xbf16, #tpu.memory_space<vmem>>, vector<30x10xbf16>
    %c256 = arith.constant 256 : index
    %c0_8 = arith.constant 0 : index
    %20 = vector.load %arg2[%c256, %c0_8] : memref<560x128xbf16, #tpu.memory_space<vmem>>, vector<1x10xbf16>
    %21 = arith.truncf %18 : vector<8x30xf32> to vector<8x30xbf16>
    %cst_9 = arith.constant dense<0.000000e+00> : vector<8x10xf32>
    %22 = tpu.matmul %21, %19, %cst_9 {dimension_numbers = #tpu.dot_dimension_numbers<[1], [0], [0], [1], [0, 0, 1, 1], [], []>} : vector<8x30xbf16>, vector<30x10xbf16>, vector<8x10xf32> -> vector<8x10xf32>
    %23 = arith.extf %20 : vector<1x10xbf16> to vector<1x10xf32>
    %24 = vector.broadcast %23 : vector<1x10xf32> to vector<8x10xf32>
    %25 = arith.addf %22, %24 : vector<8x10xf32>
    %26 = math.tanh %25 : vector<8x10xf32>
    %c272 = arith.constant 272 : index
    %c0_10 = arith.constant 0 : index
    %27 = vector.load %arg2[%c272, %c0_10] : memref<560x128xbf16, #tpu.memory_space<vmem>>, vector<1x10xbf16>
    %c288 = arith.constant 288 : index
    %c0_11 = arith.constant 0 : index
    %28 = vector.load %arg2[%c288, %c0_11] : memref<560x128xbf16, #tpu.memory_space<vmem>>, vector<1x1xbf16>
    %29 = arith.extf %28 : vector<1x1xbf16> to vector<1x1xf32>
    %30 = arith.extf %27 : vector<1x10xbf16> to vector<1x10xf32>
    %31 = vector.broadcast %30 : vector<1x10xf32> to vector<8x10xf32>
    %32 = arith.mulf %26, %31 : vector<8x10xf32>
    %cst_12 = arith.constant dense<0.000000e+00> : vector<8xf32>
    %33 = vector.multi_reduction <add>, %32, %cst_12 [1] : vector<8x10xf32> to vector<8xf32>
    %34 = vector.shape_cast %33 : vector<8xf32> to vector<8x1xf32>
    %35 = vector.broadcast %29 : vector<1x1xf32> to vector<8x1xf32>
    %36 = arith.addf %34, %35 : vector<8x1xf32>
    %c304 = arith.constant 304 : index
    %c0_13 = arith.constant 0 : index
    %37 = vector.load %arg2[%c304, %c0_13] : memref<560x128xbf16, #tpu.memory_space<vmem>>, vector<1x10xbf16>
    %c320 = arith.constant 320 : index
    %c0_14 = arith.constant 0 : index
    %38 = vector.load %arg2[%c320, %c0_14] : memref<560x128xbf16, #tpu.memory_space<vmem>>, vector<1x10xbf16>
    %39 = arith.extf %37 : vector<1x10xbf16> to vector<1x10xf32>
    %40 = vector.broadcast %36 : vector<8x1xf32> to vector<8x10xf32>
    %41 = vector.broadcast %39 : vector<1x10xf32> to vector<8x10xf32>
    %42 = arith.mulf %40, %41 : vector<8x10xf32>
    %43 = arith.extf %38 : vector<1x10xbf16> to vector<1x10xf32>
    %44 = vector.broadcast %43 : vector<1x10xf32> to vector<8x10xf32>
    %45 = arith.addf %42, %44 : vector<8x10xf32>
    %46 = math.tanh %45 : vector<8x10xf32>
    %c336 = arith.constant 336 : index
    %c0_15 = arith.constant 0 : index
    %47 = vector.load %arg2[%c336, %c0_15] : memref<560x128xbf16, #tpu.memory_space<vmem>>, vector<10x30xbf16>
    %c352 = arith.constant 352 : index
    %c0_16 = arith.constant 0 : index
    %48 = vector.load %arg2[%c352, %c0_16] : memref<560x128xbf16, #tpu.memory_space<vmem>>, vector<1x30xbf16>
    %49 = arith.truncf %46 : vector<8x10xf32> to vector<8x10xbf16>
    %cst_17 = arith.constant dense<0.000000e+00> : vector<8x30xf32>
    %50 = tpu.matmul %49, %47, %cst_17 {dimension_numbers = #tpu.dot_dimension_numbers<[1], [0], [0], [1], [0, 0, 1, 1], [], []>} : vector<8x10xbf16>, vector<10x30xbf16>, vector<8x30xf32> -> vector<8x30xf32>
    %51 = arith.extf %48 : vector<1x30xbf16> to vector<1x30xf32>
    %52 = vector.broadcast %51 : vector<1x30xf32> to vector<8x30xf32>
    %53 = arith.addf %50, %52 : vector<8x30xf32>
    %54 = math.tanh %53 : vector<8x30xf32>
    %c368 = arith.constant 368 : index
    %c0_18 = arith.constant 0 : index
    %55 = vector.load %arg2[%c368, %c0_18] : memref<560x128xbf16, #tpu.memory_space<vmem>>, vector<30x60xbf16>
    %c400 = arith.constant 400 : index
    %c0_19 = arith.constant 0 : index
    %56 = vector.load %arg2[%c400, %c0_19] : memref<560x128xbf16, #tpu.memory_space<vmem>>, vector<1x60xbf16>
    %57 = arith.truncf %54 : vector<8x30xf32> to vector<8x30xbf16>
    %cst_20 = arith.constant dense<0.000000e+00> : vector<8x60xf32>
    %58 = tpu.matmul %57, %55, %cst_20 {dimension_numbers = #tpu.dot_dimension_numbers<[1], [0], [0], [1], [0, 0, 1, 1], [], []>} : vector<8x30xbf16>, vector<30x60xbf16>, vector<8x60xf32> -> vector<8x60xf32>
    %59 = arith.extf %56 : vector<1x60xbf16> to vector<1x60xf32>
    %60 = vector.broadcast %59 : vector<1x60xf32> to vector<8x60xf32>
    %61 = arith.addf %58, %60 : vector<8x60xf32>
    %62 = math.tanh %61 : vector<8x60xf32>
    %c416 = arith.constant 416 : index
    %c0_21 = arith.constant 0 : index
    %63 = vector.load %arg2[%c416, %c0_21] : memref<560x128xbf16, #tpu.memory_space<vmem>>, vector<60x118xbf16>
    %c480 = arith.constant 480 : index
    %c0_22 = arith.constant 0 : index
    %64 = vector.load %arg2[%c480, %c0_22] : memref<560x128xbf16, #tpu.memory_space<vmem>>, vector<1x118xbf16>
    %65 = arith.truncf %62 : vector<8x60xf32> to vector<8x60xbf16>
    %cst_23 = arith.constant dense<0.000000e+00> : vector<8x118xf32>
    %66 = tpu.matmul %65, %63, %cst_23 {dimension_numbers = #tpu.dot_dimension_numbers<[1], [0], [0], [1], [0, 0, 1, 1], [], []>} : vector<8x60xbf16>, vector<60x118xbf16>, vector<8x118xf32> -> vector<8x118xf32>
    %67 = arith.extf %64 : vector<1x118xbf16> to vector<1x118xf32>
    %68 = vector.broadcast %67 : vector<1x118xf32> to vector<8x118xf32>
    %69 = arith.addf %66, %68 : vector<8x118xf32>
    %70 = arith.mulf %1, %1 : vector<8x118xf32>
    %cst_24 = arith.constant dense<0.000000e+00> : vector<8xf32>
    %71 = vector.multi_reduction <add>, %70, %cst_24 [1] : vector<8x118xf32> to vector<8xf32>
    %72 = vector.shape_cast %71 : vector<8xf32> to vector<8x1xf32>
    %73 = arith.mulf %69, %69 : vector<8x118xf32>
    %cst_25 = arith.constant dense<0.000000e+00> : vector<8xf32>
    %74 = vector.multi_reduction <add>, %73, %cst_25 [1] : vector<8x118xf32> to vector<8xf32>
    %75 = vector.shape_cast %74 : vector<8xf32> to vector<8x1xf32>
    %76 = arith.mulf %1, %69 : vector<8x118xf32>
    %cst_26 = arith.constant dense<0.000000e+00> : vector<8xf32>
    %77 = vector.multi_reduction <add>, %76, %cst_26 [1] : vector<8x118xf32> to vector<8xf32>
    %78 = vector.shape_cast %77 : vector<8xf32> to vector<8x1xf32>
    %79 = arith.addf %72, %75 : vector<8x1xf32>
    %cst_27 = arith.constant 2.000000e+00 : f32
    %80 = vector.broadcast %cst_27 : f32 to vector<8x1xf32>
    %81 = arith.mulf %80, %78 : vector<8x1xf32>
    %82 = arith.subf %79, %81 : vector<8x1xf32>
    %cst_28 = arith.constant 0.000000e+00 : f32
    %83 = vector.broadcast %cst_28 : f32 to vector<8x1xf32>
    %84 = arith.maximumf %82, %83 : vector<8x1xf32>
    %85 = math.sqrt %84 : vector<8x1xf32>
    %86 = math.rsqrt %72 : vector<8x1xf32>
    %87 = arith.mulf %85, %86 : vector<8x1xf32>
    %cst_29 = arith.constant 1.000000e-16 : f32
    %88 = vector.broadcast %cst_29 : f32 to vector<8x1xf32>
    %89 = arith.maximumf %72, %88 : vector<8x1xf32>
    %90 = math.rsqrt %89 : vector<8x1xf32>
    %91 = arith.mulf %78, %90 : vector<8x1xf32>
    %cst_30 = arith.constant 1.000000e-16 : f32
    %92 = vector.broadcast %cst_30 : f32 to vector<8x1xf32>
    %93 = arith.maximumf %75, %92 : vector<8x1xf32>
    %94 = math.rsqrt %93 : vector<8x1xf32>
    %95 = arith.mulf %91, %94 : vector<8x1xf32>
    %c496 = arith.constant 496 : index
    %c0_31 = arith.constant 0 : index
    %96 = vector.load %arg2[%c496, %c0_31] : memref<560x128xbf16, #tpu.memory_space<vmem>>, vector<3x10xbf16>
    %97 = arith.extf %96 : vector<3x10xbf16> to vector<3x10xf32>
    %c512 = arith.constant 512 : index
    %c0_32 = arith.constant 0 : index
    %98 = vector.load %arg2[%c512, %c0_32] : memref<560x128xbf16, #tpu.memory_space<vmem>>, vector<1x10xbf16>
    %99 = arith.extf %98 : vector<1x10xbf16> to vector<1x10xf32>
    %100 = vector.extract_strided_slice %97 {offsets = [0, 0], sizes = [1, 10], strides = [1, 1]} : vector<3x10xf32> to vector<1x10xf32>
    %101 = vector.broadcast %36 : vector<8x1xf32> to vector<8x10xf32>
    %102 = vector.broadcast %100 : vector<1x10xf32> to vector<8x10xf32>
    %103 = arith.mulf %101, %102 : vector<8x10xf32>
    %104 = vector.extract_strided_slice %97 {offsets = [1, 0], sizes = [1, 10], strides = [1, 1]} : vector<3x10xf32> to vector<1x10xf32>
    %105 = vector.broadcast %87 : vector<8x1xf32> to vector<8x10xf32>
    %106 = vector.broadcast %104 : vector<1x10xf32> to vector<8x10xf32>
    %107 = arith.mulf %105, %106 : vector<8x10xf32>
    %108 = arith.addf %103, %107 : vector<8x10xf32>
    %109 = vector.extract_strided_slice %97 {offsets = [2, 0], sizes = [1, 10], strides = [1, 1]} : vector<3x10xf32> to vector<1x10xf32>
    %110 = vector.broadcast %95 : vector<8x1xf32> to vector<8x10xf32>
    %111 = vector.broadcast %109 : vector<1x10xf32> to vector<8x10xf32>
    %112 = arith.mulf %110, %111 : vector<8x10xf32>
    %113 = arith.addf %108, %112 : vector<8x10xf32>
    %114 = vector.broadcast %99 : vector<1x10xf32> to vector<8x10xf32>
    %115 = arith.addf %113, %114 : vector<8x10xf32>
    %116 = math.tanh %115 : vector<8x10xf32>
    %117 = arith.mulf %116, %2 : vector<8x10xf32>
    %c528 = arith.constant 528 : index
    %c0_33 = arith.constant 0 : index
    %118 = vector.load %arg2[%c528, %c0_33] : memref<560x128xbf16, #tpu.memory_space<vmem>>, vector<2x10xbf16>
    %119 = arith.extf %118 : vector<2x10xbf16> to vector<2x10xf32>
    %c544 = arith.constant 544 : index
    %c0_34 = arith.constant 0 : index
    %120 = vector.load %arg2[%c544, %c0_34] : memref<560x128xbf16, #tpu.memory_space<vmem>>, vector<1x2xbf16>
    %121 = arith.extf %120 : vector<1x2xbf16> to vector<1x2xf32>
    %122 = vector.extract_strided_slice %119 {offsets = [0, 0], sizes = [1, 10], strides = [1, 1]} : vector<2x10xf32> to vector<1x10xf32>
    %123 = vector.broadcast %122 : vector<1x10xf32> to vector<8x10xf32>
    %124 = arith.mulf %117, %123 : vector<8x10xf32>
    %cst_35 = arith.constant dense<0.000000e+00> : vector<8xf32>
    %125 = vector.multi_reduction <add>, %124, %cst_35 [1] : vector<8x10xf32> to vector<8xf32>
    %126 = vector.shape_cast %125 : vector<8xf32> to vector<8x1xf32>
    %127 = vector.extract_strided_slice %121 {offsets = [0, 0], sizes = [1, 1], strides = [1, 1]} : vector<1x2xf32> to vector<1x1xf32>
    %128 = vector.broadcast %127 : vector<1x1xf32> to vector<8x1xf32>
    %129 = arith.addf %126, %128 : vector<8x1xf32>
    %130 = vector.extract_strided_slice %119 {offsets = [1, 0], sizes = [1, 10], strides = [1, 1]} : vector<2x10xf32> to vector<1x10xf32>
    %131 = vector.broadcast %130 : vector<1x10xf32> to vector<8x10xf32>
    %132 = arith.mulf %117, %131 : vector<8x10xf32>
    %cst_36 = arith.constant dense<0.000000e+00> : vector<8xf32>
    %133 = vector.multi_reduction <add>, %132, %cst_36 [1] : vector<8x10xf32> to vector<8xf32>
    %134 = vector.shape_cast %133 : vector<8xf32> to vector<8x1xf32>
    %135 = vector.extract_strided_slice %121 {offsets = [0, 1], sizes = [1, 1], strides = [1, 1]} : vector<1x2xf32> to vector<1x1xf32>
    %136 = vector.broadcast %135 : vector<1x1xf32> to vector<8x1xf32>
    %137 = arith.addf %134, %136 : vector<8x1xf32>
    %138 = arith.maximumf %129, %137 : vector<8x1xf32>
    %139 = arith.subf %129, %138 : vector<8x1xf32>
    %140 = math.exp %139 : vector<8x1xf32>
    %141 = arith.subf %137, %138 : vector<8x1xf32>
    %142 = math.exp %141 : vector<8x1xf32>
    %143 = arith.addf %140, %142 : vector<8x1xf32>
    %144 = tpu.reciprocal %143 {approx = true} : vector<8x1xf32> -> vector<8x1xf32>
    %145 = arith.mulf %140, %144 : vector<8x1xf32>
    %146 = arith.mulf %142, %144 : vector<8x1xf32>
    %147 = tpu.concatenate %145, %146 in 1 : vector<8x1xf32>, vector<8x1xf32> -> vector<8x2xf32>
    %cst_37 = arith.constant 0.000000e+00 : f32
    %148 = vector.broadcast %cst_37 : f32 to vector<8x5xf32>
    %149 = tpu.concatenate %69, %36, %87, %95, %147, %148 in 1 : vector<8x118xf32>, vector<8x1xf32>, vector<8x1xf32>, vector<8x1xf32>, vector<8x2xf32>, vector<8x5xf32> -> vector<8x128xf32>
    %c0_38 = arith.constant 0 : index
    %c0_39 = arith.constant 0 : index
    %150 = vector.load %arg3[%c0_38, %c0_39] : memref<8x128xf32, #tpu.memory_space<vmem>>, vector<8x128xf32>
    tpu.vector_store %arg3[%c0_38, %c0_39], %149 {strides = array<i32>} : memref<8x128xf32, #tpu.memory_space<vmem>>, vector<8x128xf32>,
    return
  }
  func.func @transform_0(%arg0: i32) -> (i32, i32) {
    %c0_i32 = arith.constant 0 : i32
    %c0_i32_0 = arith.constant 0 : i32
    return %arg0, %c0_i32 : i32, i32
  }
  func.func @transform_1(%arg0: i32) -> (i32, i32) {
    %c0_i32 = arith.constant 0 : i32
    %c0_i32_0 = arith.constant 0 : i32
    %c0_i32_1 = arith.constant 0 : i32
    return %c0_i32, %c0_i32_0 : i32, i32
  }
  func.func @transform_2(%arg0: i32) -> (i32, i32) {
    %c0_i32 = arith.constant 0 : i32
    %c0_i32_0 = arith.constant 0 : i32
    return %arg0, %c0_i32 : i32, i32
  }
}

module attributes {stable_mosaic.version = 11 : i64} {
  func.func @_dalmm_kernel(%arg0: i32, %arg1: memref<8x128xf32, #tpu.memory_space<vmem>>, %arg2: memref<560x128xbf16, #tpu.memory_space<vmem>>, %arg3: memref<8x128xf32, #tpu.memory_space<vmem>>) attributes {dimension_semantics = [#tpu.dimension_semantics<parallel>], iteration_bounds = array<i64: 1>, scalar_prefetch = 0 : i64, scratch_operands = 0 : i64, tpu.core_type = #tpu.core_type<tc>, window_params = [{transform_indices = @transform_0, window_bounds = array<i64: 8, 128>}, {pipeline_mode = #tpu.pipeline_mode<synchronous>, transform_indices = @transform_1, window_bounds = array<i64: 560, 128>}, {transform_indices = @transform_2, window_bounds = array<i64: 8, 128>}]} {
    %c0 = arith.constant 0 : index
    %c0_0 = arith.constant 0 : index
    %0 = vector.load %arg1[%c0, %c0_0] : memref<8x128xf32, #tpu.memory_space<vmem>>, vector<8x128xf32>
    %1 = vector.extract_strided_slice %0 {offsets = [0, 0], sizes = [8, 118], strides = [1, 1]} : vector<8x128xf32> to vector<8x118xf32>
    %2 = vector.extract_strided_slice %0 {offsets = [0, 118], sizes = [8, 10], strides = [1, 1]} : vector<8x128xf32> to vector<8x10xf32>
    %c0_1 = arith.constant 0 : index
    %c0_2 = arith.constant 0 : index
    %3 = vector.load %arg2[%c0_1, %c0_2] : memref<560x128xbf16, #tpu.memory_space<vmem>>, vector<118x60xbf16>
    %c128 = arith.constant 128 : index
    %c0_3 = arith.constant 0 : index
    %4 = vector.load %arg2[%c128, %c0_3] : memref<560x128xbf16, #tpu.memory_space<vmem>>, vector<1x60xbf16>
    %5 = arith.truncf %1 : vector<8x118xf32> to vector<8x118xbf16>
    %cst = arith.constant dense<0.000000e+00> : vector<8x60xf32>
    %6 = tpu.matmul %5, %3, %cst {dimension_numbers = #tpu.dot_dimension_numbers<[1], [0], [0], [1], [0, 0, 1, 1], [], []>} : vector<8x118xbf16>, vector<118x60xbf16>, vector<8x60xf32> -> vector<8x60xf32>
    %7 = arith.extf %4 : vector<1x60xbf16> to vector<1x60xf32>
    %8 = vector.broadcast %7 : vector<1x60xf32> to vector<8x60xf32>
    %9 = arith.addf %6, %8 : vector<8x60xf32>
    %10 = math.tanh %9 : vector<8x60xf32>
    %c144 = arith.constant 144 : index
    %c0_4 = arith.constant 0 : index
    %11 = vector.load %arg2[%c144, %c0_4] : memref<560x128xbf16, #tpu.memory_space<vmem>>, vector<60x30xbf16>
    %c208 = arith.constant 208 : index
    %c0_5 = arith.constant 0 : index
    %12 = vector.load %arg2[%c208, %c0_5] : memref<560x128xbf16, #tpu.memory_space<vmem>>, vector<1x30xbf16>
    %13 = arith.truncf %10 : vector<8x60xf32> to vector<8x60xbf16>
    %cst_6 = arith.constant dense<0.000000e+00> : vector<8x30xf32>
    %14 = tpu.matmul %13, %11, %cst_6 {dimension_numbers = #tpu.dot_dimension_numbers<[1], [0], [0], [1], [0, 0, 1, 1], [], []>} : vector<8x60xbf16>, vector<60x30xbf16>, vector<8x30xf32> -> vector<8x30xf32>
    %15 = arith.extf %12 : vector<1x30xbf16> to vector<1x30xf32>
    %16 = vector.broadcast %15 : vector<1x30xf32> to vector<8x30xf32>
    %17 = arith.addf %14, %16 : vector<8x30xf32>
    %18 = math.tanh %17 : vector<8x30xf32>
    %c224 = arith.constant 224 : index
    %c0_7 = arith.constant 0 : index
    %19 = vector.load %arg2[%c224, %c0_7] : memref<560x128xbf16, #tpu.memory_space<vmem>>, vector<30x10xbf16>
    %c256 = arith.constant 256 : index
    %c0_8 = arith.constant 0 : index
    %20 = vector.load %arg2[%c256, %c0_8] : memref<560x128xbf16, #tpu.memory_space<vmem>>, vector<1x10xbf16>
    %21 = arith.truncf %18 : vector<8x30xf32> to vector<8x30xbf16>
    %cst_9 = arith.constant dense<0.000000e+00> : vector<8x10xf32>
    %22 = tpu.matmul %21, %19, %cst_9 {dimension_numbers = #tpu.dot_dimension_numbers<[1], [0], [0], [1], [0, 0, 1, 1], [], []>} : vector<8x30xbf16>, vector<30x10xbf16>, vector<8x10xf32> -> vector<8x10xf32>
    %23 = arith.extf %20 : vector<1x10xbf16> to vector<1x10xf32>
    %24 = vector.broadcast %23 : vector<1x10xf32> to vector<8x10xf32>
    %25 = arith.addf %22, %24 : vector<8x10xf32>
    %26 = math.tanh %25 : vector<8x10xf32>
    %c272 = arith.constant 272 : index
    %c0_10 = arith.constant 0 : index
    %27 = vector.load %arg2[%c272, %c0_10] : memref<560x128xbf16, #tpu.memory_space<vmem>>, vector<1x10xbf16>
    %c288 = arith.constant 288 : index
    %c0_11 = arith.constant 0 : index
    %28 = vector.load %arg2[%c288, %c0_11] : memref<560x128xbf16, #tpu.memory_space<vmem>>, vector<1x1xbf16>
    %29 = arith.extf %28 : vector<1x1xbf16> to vector<1x1xf32>
    %30 = arith.extf %27 : vector<1x10xbf16> to vector<1x10xf32>
    %31 = vector.broadcast %30 : vector<1x10xf32> to vector<8x10xf32>
    %32 = arith.mulf %26, %31 : vector<8x10xf32>
    %cst_12 = arith.constant dense<0.000000e+00> : vector<8xf32>
    %33 = vector.multi_reduction <add>, %32, %cst_12 [1] : vector<8x10xf32> to vector<8xf32>
    %34 = vector.shape_cast %33 : vector<8xf32> to vector<8x1xf32>
    %35 = vector.broadcast %29 : vector<1x1xf32> to vector<8x1xf32>
    %36 = arith.addf %34, %35 : vector<8x1xf32>
    %c304 = arith.constant 304 : index
    %c0_13 = arith.constant 0 : index
    %37 = vector.load %arg2[%c304, %c0_13] : memref<560x128xbf16, #tpu.memory_space<vmem>>, vector<1x10xbf16>
    %c320 = arith.constant 320 : index
    %c0_14 = arith.constant 0 : index
    %38 = vector.load %arg2[%c320, %c0_14] : memref<560x128xbf16, #tpu.memory_space<vmem>>, vector<1x10xbf16>
    %39 = arith.extf %37 : vector<1x10xbf16> to vector<1x10xf32>
    %40 = vector.broadcast %36 : vector<8x1xf32> to vector<8x10xf32>
    %41 = vector.broadcast %39 : vector<1x10xf32> to vector<8x10xf32>
    %42 = arith.mulf %40, %41 : vector<8x10xf32>
    %43 = arith.extf %38 : vector<1x10xbf16> to vector<1x10xf32>
    %44 = vector.broadcast %43 : vector<1x10xf32> to vector<8x10xf32>
    %45 = arith.addf %42, %44 : vector<8x10xf32>
    %46 = math.tanh %45 : vector<8x10xf32>
    %c336 = arith.constant 336 : index
    %c0_15 = arith.constant 0 : index
    %47 = vector.load %arg2[%c336, %c0_15] : memref<560x128xbf16, #tpu.memory_space<vmem>>, vector<10x30xbf16>
    %c352 = arith.constant 352 : index
    %c0_16 = arith.constant 0 : index
    %48 = vector.load %arg2[%c352, %c0_16] : memref<560x128xbf16, #tpu.memory_space<vmem>>, vector<1x30xbf16>
    %49 = arith.truncf %46 : vector<8x10xf32> to vector<8x10xbf16>
    %cst_17 = arith.constant dense<0.000000e+00> : vector<8x30xf32>
    %50 = tpu.matmul %49, %47, %cst_17 {dimension_numbers = #tpu.dot_dimension_numbers<[1], [0], [0], [1], [0, 0, 1, 1], [], []>} : vector<8x10xbf16>, vector<10x30xbf16>, vector<8x30xf32> -> vector<8x30xf32>
    %51 = arith.extf %48 : vector<1x30xbf16> to vector<1x30xf32>
    %52 = vector.broadcast %51 : vector<1x30xf32> to vector<8x30xf32>
    %53 = arith.addf %50, %52 : vector<8x30xf32>
    %54 = math.tanh %53 : vector<8x30xf32>
    %c368 = arith.constant 368 : index
    %c0_18 = arith.constant 0 : index
    %55 = vector.load %arg2[%c368, %c0_18] : memref<560x128xbf16, #tpu.memory_space<vmem>>, vector<30x60xbf16>
    %c400 = arith.constant 400 : index
    %c0_19 = arith.constant 0 : index
    %56 = vector.load %arg2[%c400, %c0_19] : memref<560x128xbf16, #tpu.memory_space<vmem>>, vector<1x60xbf16>
    %57 = arith.truncf %54 : vector<8x30xf32> to vector<8x30xbf16>
    %cst_20 = arith.constant dense<0.000000e+00> : vector<8x60xf32>
    %58 = tpu.matmul %57, %55, %cst_20 {dimension_numbers = #tpu.dot_dimension_numbers<[1], [0], [0], [1], [0, 0, 1, 1], [], []>} : vector<8x30xbf16>, vector<30x60xbf16>, vector<8x60xf32> -> vector<8x60xf32>
    %59 = arith.extf %56 : vector<1x60xbf16> to vector<1x60xf32>
    %60 = vector.broadcast %59 : vector<1x60xf32> to vector<8x60xf32>
    %61 = arith.addf %58, %60 : vector<8x60xf32>
    %62 = math.tanh %61 : vector<8x60xf32>
    %c416 = arith.constant 416 : index
    %c0_21 = arith.constant 0 : index
    %63 = vector.load %arg2[%c416, %c0_21] : memref<560x128xbf16, #tpu.memory_space<vmem>>, vector<60x118xbf16>
    %c480 = arith.constant 480 : index
    %c0_22 = arith.constant 0 : index
    %64 = vector.load %arg2[%c480, %c0_22] : memref<560x128xbf16, #tpu.memory_space<vmem>>, vector<1x118xbf16>
    %65 = arith.truncf %62 : vector<8x60xf32> to vector<8x60xbf16>
    %cst_23 = arith.constant dense<0.000000e+00> : vector<8x118xf32>
    %66 = tpu.matmul %65, %63, %cst_23 {dimension_numbers = #tpu.dot_dimension_numbers<[1], [0], [0], [1], [0, 0, 1, 1], [], []>} : vector<8x60xbf16>, vector<60x118xbf16>, vector<8x118xf32> -> vector<8x118xf32>
    %67 = arith.extf %64 : vector<1x118xbf16> to vector<1x118xf32>
    %68 = vector.broadcast %67 : vector<1x118xf32> to vector<8x118xf32>
    %69 = arith.addf %66, %68 : vector<8x118xf32>
    %70 = arith.mulf %1, %1 : vector<8x118xf32>
    %cst_24 = arith.constant dense<0.000000e+00> : vector<8xf32>
    %71 = vector.multi_reduction <add>, %70, %cst_24 [1] : vector<8x118xf32> to vector<8xf32>
    %72 = vector.shape_cast %71 : vector<8xf32> to vector<8x1xf32>
    %73 = arith.mulf %69, %69 : vector<8x118xf32>
    %cst_25 = arith.constant dense<0.000000e+00> : vector<8xf32>
    %74 = vector.multi_reduction <add>, %73, %cst_25 [1] : vector<8x118xf32> to vector<8xf32>
    %75 = vector.shape_cast %74 : vector<8xf32> to vector<8x1xf32>
    %76 = arith.mulf %1, %69 : vector<8x118xf32>
    %cst_26 = arith.constant dense<0.000000e+00> : vector<8xf32>
    %77 = vector.multi_reduction <add>, %76, %cst_26 [1] : vector<8x118xf32> to vector<8xf32>
    %78 = vector.shape_cast %77 : vector<8xf32> to vector<8x1xf32>
    %79 = arith.addf %72, %75 : vector<8x1xf32>
    %cst_27 = arith.constant 2.000000e+00 : f32
    %80 = vector.broadcast %cst_27 : f32 to vector<8x1xf32>
    %81 = arith.mulf %80, %78 : vector<8x1xf32>
    %82 = arith.subf %79, %81 : vector<8x1xf32>
    %cst_28 = arith.constant 0.000000e+00 : f32
    %83 = vector.broadcast %cst_28 : f32 to vector<8x1xf32>
    %84 = arith.maximumf %82, %83 : vector<8x1xf32>
    %85 = math.sqrt %84 : vector<8x1xf32>
    %86 = math.rsqrt %72 : vector<8x1xf32>
    %87 = arith.mulf %85, %86 : vector<8x1xf32>
    %cst_29 = arith.constant 1.000000e-16 : f32
    %88 = vector.broadcast %cst_29 : f32 to vector<8x1xf32>
    %89 = arith.maximumf %72, %88 : vector<8x1xf32>
    %90 = math.rsqrt %89 : vector<8x1xf32>
    %91 = arith.mulf %78, %90 : vector<8x1xf32>
    %cst_30 = arith.constant 1.000000e-16 : f32
    %92 = vector.broadcast %cst_30 : f32 to vector<8x1xf32>
    %93 = arith.maximumf %75, %92 : vector<8x1xf32>
    %94 = math.rsqrt %93 : vector<8x1xf32>
    %95 = arith.mulf %91, %94 : vector<8x1xf32>
    %c496 = arith.constant 496 : index
    %c0_31 = arith.constant 0 : index
    %96 = vector.load %arg2[%c496, %c0_31] : memref<560x128xbf16, #tpu.memory_space<vmem>>, vector<3x10xbf16>
    %97 = arith.extf %96 : vector<3x10xbf16> to vector<3x10xf32>
    %c512 = arith.constant 512 : index
    %c0_32 = arith.constant 0 : index
    %98 = vector.load %arg2[%c512, %c0_32] : memref<560x128xbf16, #tpu.memory_space<vmem>>, vector<1x10xbf16>
    %99 = arith.extf %98 : vector<1x10xbf16> to vector<1x10xf32>
    %100 = vector.extract_strided_slice %97 {offsets = [0, 0], sizes = [1, 10], strides = [1, 1]} : vector<3x10xf32> to vector<1x10xf32>
    %101 = vector.broadcast %36 : vector<8x1xf32> to vector<8x10xf32>
    %102 = vector.broadcast %100 : vector<1x10xf32> to vector<8x10xf32>
    %103 = arith.mulf %101, %102 : vector<8x10xf32>
    %104 = vector.extract_strided_slice %97 {offsets = [1, 0], sizes = [1, 10], strides = [1, 1]} : vector<3x10xf32> to vector<1x10xf32>
    %105 = vector.broadcast %87 : vector<8x1xf32> to vector<8x10xf32>
    %106 = vector.broadcast %104 : vector<1x10xf32> to vector<8x10xf32>
    %107 = arith.mulf %105, %106 : vector<8x10xf32>
    %108 = arith.addf %103, %107 : vector<8x10xf32>
    %109 = vector.extract_strided_slice %97 {offsets = [2, 0], sizes = [1, 10], strides = [1, 1]} : vector<3x10xf32> to vector<1x10xf32>
    %110 = vector.broadcast %95 : vector<8x1xf32> to vector<8x10xf32>
    %111 = vector.broadcast %109 : vector<1x10xf32> to vector<8x10xf32>
    %112 = arith.mulf %110, %111 : vector<8x10xf32>
    %113 = arith.addf %108, %112 : vector<8x10xf32>
    %114 = vector.broadcast %99 : vector<1x10xf32> to vector<8x10xf32>
    %115 = arith.addf %113, %114 : vector<8x10xf32>
    %116 = math.tanh %115 : vector<8x10xf32>
    %117 = arith.mulf %116, %2 : vector<8x10xf32>
    %c528 = arith.constant 528 : index
    %c0_33 = arith.constant 0 : index
    %118 = vector.load %arg2[%c528, %c0_33] : memref<560x128xbf16, #tpu.memory_space<vmem>>, vector<2x10xbf16>
    %119 = arith.extf %118 : vector<2x10xbf16> to vector<2x10xf32>
    %c544 = arith.constant 544 : index
    %c0_34 = arith.constant 0 : index
    %120 = vector.load %arg2[%c544, %c0_34] : memref<560x128xbf16, #tpu.memory_space<vmem>>, vector<1x2xbf16>
    %121 = arith.extf %120 : vector<1x2xbf16> to vector<1x2xf32>
    %122 = vector.extract_strided_slice %119 {offsets = [0, 0], sizes = [1, 10], strides = [1, 1]} : vector<2x10xf32> to vector<1x10xf32>
    %123 = vector.broadcast %122 : vector<1x10xf32> to vector<8x10xf32>
    %124 = arith.mulf %117, %123 : vector<8x10xf32>
    %cst_35 = arith.constant dense<0.000000e+00> : vector<8xf32>
    %125 = vector.multi_reduction <add>, %124, %cst_35 [1] : vector<8x10xf32> to vector<8xf32>
    %126 = vector.shape_cast %125 : vector<8xf32> to vector<8x1xf32>
    %127 = vector.extract_strided_slice %121 {offsets = [0, 0], sizes = [1, 1], strides = [1, 1]} : vector<1x2xf32> to vector<1x1xf32>
    %128 = vector.broadcast %127 : vector<1x1xf32> to vector<8x1xf32>
    %129 = arith.addf %126, %128 : vector<8x1xf32>
    %130 = vector.extract_strided_slice %119 {offsets = [1, 0], sizes = [1, 10], strides = [1, 1]} : vector<2x10xf32> to vector<1x10xf32>
    %131 = vector.broadcast %130 : vector<1x10xf32> to vector<8x10xf32>
    %132 = arith.mulf %117, %131 : vector<8x10xf32>
    %cst_36 = arith.constant dense<0.000000e+00> : vector<8xf32>
    %133 = vector.multi_reduction <add>, %132, %cst_36 [1] : vector<8x10xf32> to vector<8xf32>
    %134 = vector.shape_cast %133 : vector<8xf32> to vector<8x1xf32>
    %135 = vector.extract_strided_slice %121 {offsets = [0, 1], sizes = [1, 1], strides = [1, 1]} : vector<1x2xf32> to vector<1x1xf32>
    %136 = vector.broadcast %135 : vector<1x1xf32> to vector<8x1xf32>
    %137 = arith.addf %134, %136 : vector<8x1xf32>
    %138 = arith.maximumf %129, %137 : vector<8x1xf32>
    %139 = arith.subf %129, %138 : vector<8x1xf32>
    %140 = math.exp %139 : vector<8x1xf32>
    %141 = arith.subf %137, %138 : vector<8x1xf32>
    %142 = math.exp %141 : vector<8x1xf32>
    %143 = arith.addf %140, %142 : vector<8x1xf32>
    %144 = tpu.reciprocal %143 {approx = true} : vector<8x1xf32> -> vector<8x1xf32>
    %145 = arith.mulf %140, %144 : vector<8x1xf32>
    %146 = arith.mulf %142, %144 : vector<8x1xf32>
    %147 = tpu.concatenate %145, %146 in 1 : vector<8x1xf32>, vector<8x1xf32> -> vector<8x2xf32>
    %cst_37 = arith.constant 0.000000e+00 : f32
    %148 = vector.broadcast %cst_37 : f32 to vector<8x5xf32>
    %149 = tpu.concatenate %69, %36, %87, %95, %147, %148 in 1 : vector<8x118xf32>, vector<8x1xf32>, vector<8x1xf32>, vector<8x1xf32>, vector<8x2xf32>, vector<8x5xf32> -> vector<8x128xf32>
    %c0_38 = arith.constant 0 : index
    %c0_39 = arith.constant 0 : index
    %150 = vector.load %arg3[%c0_38, %c0_39] : memref<8x128xf32, #tpu.memory_space<vmem>>, vector<8x128xf32>
    tpu.vector_store %arg3[%c0_38, %c0_39], %149 {strides = array<i32>} : memref<8x128xf32, #tpu.memory_space<vmem>>, vector<8x128xf32>,
    return
  }
  func.func @transform_0(%arg0: i32) -> (i32, i32) {
    %c0_i32 = arith.constant 0 : i32
    %c0_i32_0 = arith.constant 0 : i32
    return %arg0, %c0_i32 : i32, i32
  }
  func.func @transform_1(%arg0: i32) -> (i32, i32) {
    %c0_i32 = arith.constant 0 : i32
    %c0_i32_0 = arith.constant 0 : i32
    %c0_i32_1 = arith.constant 0 : i32
    return %c0_i32, %c0_i32_0 : i32, i32
  }
  func.func @transform_2(%arg0: i32) -> (i32, i32) {
    %c0_i32 = arith.constant 0 : i32
    %c0_i32_0 = arith.constant 0 : i32
    return %arg0, %c0_i32 : i32, i32
  }
}

</mosaic_0001>

<llo_original>
// kernel: tpu_custom_call.1
$region0: #{tpu_custom_call.1}
  #allocation0 [shape = 'u32[]', space=smem, size = 0x4, offset = 0x4, fixed_abs, tag = 'smem constant byte address 0x4 - core index']
  #allocation1 [shape = 'u32[72,128]{1,0:T(1,128)}', space=vmem, size = 0x9000, scoped, tag = 'internal scratch']
  %s0 = inlined_call_operand.hbm [shape: f32[8,128], index: 0, kind: input, shape index: {}]
  %s1 = inlined_call_operand.hbm [shape: bf16[560,128], index: 1, kind: input, shape index: {}]
  %s2 = inlined_call_operand.hbm [shape: f32[8,128], index: 2, kind: output, shape index: {}]
  %s3 = sld [smem:[#allocation0]]
  $region26: #{tpu_custom_call.1} parent=0
    _
  %s5 = ssub.s32 1, %s3
  %s6 = scalar_select 0, %s5, %s3
  $region1: #{tpu_custom_call.1} parent=0
    #allocation2 [shape = 'u8[4096]{0}', space=vmem, size = 0x1000, scoped, tag = 'input window, operand 0, single buffered']
    #allocation3 [shape = 's32[1]{0}', space=sflag, size = 0x4, scoped, tag = 'scoped memory for tpu_custom_call.1']
    #allocation4 [shape = 's32[1]{0}', space=sflag, size = 0x4, scoped, tag = 'scoped memory for tpu_custom_call.1']
    #allocation5 [shape = 'u8[143360]{0}', space=vmem, size = 0x23000, scoped, tag = 'input window, operand 1, single buffered']
    #allocation6 [shape = 's32[1]{0}', space=sflag, size = 0x4, scoped, tag = 'scoped memory for tpu_custom_call.1']
    #allocation7 [shape = 'u8[4096]{0}', space=vmem, size = 0x1000, scoped, tag = 'output window, operand 0, single buffered']
    %7 = vsyncpa [#allocation3], 0
    %8 = vsyncpa [#allocation6], 0
    %9 = vsyncpa [#allocation4], 0
    // Predicated region
    $region2: #{tpu_custom_call.1} parent=1 // pred_check
      _
    $region3: #{tpu_custom_call.1} parent=1 // pred_check_branch
      %11 = sbr.rel (0) target = $region5
    $region4: #{tpu_custom_call.1} parent=1 // pred_region
      %13 = vsyncadd [#allocation3], 0
      %s15 = sshll.u32 %s0, 4
      %s16 = int_to_ptr.hbm [resolvable:$true] %s15
      %s17 = sshll.u32 [#allocation2], 4
      %s18 = int_to_ptr.vmem [resolvable:$true] %s17
      %20 = dma.hbm_to_vmem [thread:$0]  %s16, 128, %s18, [#allocation3]
    $region5: #{tpu_custom_call.1} parent=1 // pred_fallthru
      _
    // Predicated region
    $region6: #{tpu_custom_call.1} parent=1 // pred_check
      _
    $region7: #{tpu_custom_call.1} parent=1 // pred_check_branch
      %22 = sbr.rel (0) target = $region9
    $region8: #{tpu_custom_call.1} parent=1 // pred_region
      %24 = vsyncadd [#allocation6], 0
      %s25 = sshll.u32 %s1, 4
      %s26 = int_to_ptr.hbm [resolvable:$true] %s25
      %s27 = sshll.u32 [#allocation5], 4
      %s28 = int_to_ptr.vmem [resolvable:$true] %s27
      %33 = dma.hbm_to_vmem [thread:$0]  %s26, 4480, %s28, [#allocation6], 64, 64, 4
    $region9: #{tpu_custom_call.1} parent=1 // pred_fallthru
      _
    // Predicated region
    $region10: #{tpu_custom_call.1} parent=1 // pred_check
      _
    $region11: #{tpu_custom_call.1} parent=1 // pred_check_branch
      %35 = sbr.rel (0) target = $region13
    $region12: #{tpu_custom_call.1} parent=1 // pred_region
      %37 = dma.done [#allocation3], 128
    $region13: #{tpu_custom_call.1} parent=1 // pred_fallthru
      _
    // Predicated region
    $region14: #{tpu_custom_call.1} parent=1 // pred_check
      _
    $region15: #{tpu_custom_call.1} parent=1 // pred_check_branch
      %39 = sbr.rel (0) target = $region17
    $region16: #{tpu_custom_call.1} parent=1 // pred_region
      %41 = dma.done [#allocation6], 4480
    $region17: #{tpu_custom_call.1} parent=1 // pred_fallthru
      _
    %v43 = vld [vmem:[#allocation2] sm:$0xff]
    %v44 = vld [vmem:[#allocation5] sm:$0xf]
    %v45 = vld [vmem:[#allocation5 + $0x4] sm:$0xf]
    %v46 = vld [vmem:[#allocation5 + $0x8] sm:$0xf]
    %v47 = vld [vmem:[#allocation5 + $0xc] sm:$0xf]
    %v48 = vld [vmem:[#allocation5 + $0x10] sm:$0xf]
    %v49 = vld [vmem:[#allocation5 + $0x14] sm:$0xf]
    %v50 = vld [vmem:[#allocation5 + $0x18] sm:$0xf]
    %v51 = vld [vmem:[#allocation5 + $0x1c] sm:$0xf]
    %v52 = vld [vmem:[#allocation5 + $0x20] sm:$0xf]
    %v53 = vld [vmem:[#allocation5 + $0x24] sm:$0xf]
    %v54 = vld [vmem:[#allocation5 + $0x28] sm:$0xf]
    %v55 = vld [vmem:[#allocation5 + $0x2c] sm:$0xf]
    %v56 = vld [vmem:[#allocation5 + $0x30] sm:$0xf]
    %v57 = vld [vmem:[#allocation5 + $0x34] sm:$0xf]
    %v58 = vld [vmem:[#allocation5 + $0x38] sm:$0x7]
    %v59 = vld [vmem:[#allocation5 + $0x40] sm:$0x1]
    %v60 = vpack.c.bf16 %v43, %v43
    %v61 = vunpack.c.l.bf16 %v59
    %v62 = vperm.slane %v61, 0
    %v78 = vunpack.c.l.b16 %v44
    %v79 = vunpack.c.l.b16 %v45
    %v80 = vunpack.c.l.b16 %v46
    %v81 = vunpack.c.l.b16 %v47
    %v82 = vunpack.c.l.b16 %v48
    %v83 = vunpack.c.l.b16 %v49
    %v84 = vunpack.c.l.b16 %v50
    %v85 = vunpack.c.l.b16 %v51
    %v86 = vunpack.c.l.b16 %v52
    %v87 = vunpack.c.l.b16 %v53
    %v88 = vunpack.c.l.b16 %v54
    %v89 = vunpack.c.l.b16 %v55
    %v90 = vunpack.c.l.b16 %v56
    %v91 = vunpack.c.l.b16 %v57
    %v92 = vunpack.c.l.b16 %v58
    %v93 = vpack.c.b16 %v79, %v78
    %v94 = vpack.c.b16 %v81, %v80
    %v95 = vpack.c.b16 %v83, %v82
    %v96 = vpack.c.b16 %v85, %v84
    %v97 = vpack.c.b16 %v87, %v86
    %v98 = vpack.c.b16 %v89, %v88
    %v99 = vpack.c.b16 %v91, %v90
    %v100 = vpack.c.b16 %v92, %v92
    %vm108 = vcmask 965632
    %v110 = vsel %vm108, %v60, 0
    %vm112 = vcmask 1042432
    %v114 = vsel %vm112, %v100, 0
    %116 = vmatpush.bf16.msra.mxu0 %v114
    %117 = vmatpush.bf16.msra.mxu0 %v99
    %118 = vmatpush.bf16.msra.mxu0 %v98
    %119 = vmatpush.bf16.msra.mxu0 %v97
    %120 = vmatpush.bf16.msra.mxu0 %v96
    %121 = vmatpush.bf16.msra.mxu0 %v95
    %122 = vmatpush.bf16.msra.mxu0 %v94
    %123 = vmatpush.bf16.msra.mxu0 %v93
    %124 = vmatmul.bf16.gmra.mxu0 %v110
    %v125 = vpop.f32.mrf.mxu0
    %v126 = vadd.f32 %v62, %v125
    %v127 = vpop.f32.mrf.mxu0
    %128 = vdwg.mxu0
    %v129 = vtanh.pop %v126
    %v130 = vld [vmem:[#allocation5 + $0x48] sm:$0xf]
    %v131 = vld [vmem:[#allocation5 + $0x4c] sm:$0xf]
    %v132 = vld [vmem:[#allocation5 + $0x50] sm:$0xf]
    %v133 = vld [vmem:[#allocation5 + $0x54] sm:$0xf]
    %v134 = vld [vmem:[#allocation5 + $0x58] sm:$0xf]
    %v135 = vld [vmem:[#allocation5 + $0x5c] sm:$0xf]
    %v136 = vld [vmem:[#allocation5 + $0x60] sm:$0xf]
    %v137 = vld [vmem:[#allocation5 + $0x64] sm:$0x3]
    %v138 = vld [vmem:[#allocation5 + $0x68] sm:$0x1]
    %v139 = vpack.c.bf16 %v129, %v129
    %v140 = vunpack.c.l.bf16 %v138
    %v141 = vperm.slane %v140, 0
    %v150 = vunpack.c.l.b16 %v130
    %v151 = vunpack.c.l.b16 %v131
    %v152 = vunpack.c.l.b16 %v132
    %v153 = vunpack.c.l.b16 %v133
    %v154 = vunpack.c.l.b16 %v134
    %v155 = vunpack.c.l.b16 %v135
    %v156 = vunpack.c.l.b16 %v136
    %v157 = vunpack.c.l.b16 %v137
    %v158 = vpack.c.b16 %v151, %v150
    %v159 = vpack.c.b16 %v153, %v152
    %v160 = vpack.c.b16 %v155, %v154
    %v161 = vpack.c.b16 %v157, %v156
    %vm165 = vcmask 490496
    %v167 = vsel %vm165, %v139, 0
    %vm169 = vcmask 1045504
    %v171 = vsel %vm169, %v161, 0
    %173 = vmatpush.bf16.msra.mxu0 0
    %174 = vmatpush.bf16.msra.mxu0 0
    %175 = vmatpush.bf16.msra.mxu0 0
    %176 = vmatpush.bf16.msra.mxu0 0
    %177 = vmatpush.bf16.msra.mxu0 %v171
    %178 = vmatpush.bf16.msra.mxu0 %v160
    %179 = vmatpush.bf16.msra.mxu0 %v159
    %180 = vmatpush.bf16.msra.mxu0 %v158
    %181 = vmatmul.bf16.gmra.mxu0 %v167
    %v182 = vpop.f32.mrf.mxu0
    %v183 = vadd.f32 %v141, %v182
    %v184 = vpop.f32.mrf.mxu0
    %185 = vdwg.mxu0
    %v186 = vtanh.pop %v183
    %v187 = vld [vmem:[#allocation5 + $0x70] sm:$0xf]
    %v188 = vld [vmem:[#allocation5 + $0x74] sm:$0xf]
    %v189 = vld [vmem:[#allocation5 + $0x78] sm:$0xf]
    %v190 = vld [vmem:[#allocation5 + $0x7c] sm:$0x7]
    %v191 = vld [vmem:[#allocation5 + $0x80] sm:$0x1]
    %v192 = vpack.c.bf16 %v186, %v186
    %v193 = vunpack.c.l.bf16 %v191
    %v194 = vperm.slane %v193, 0
    %v199 = vunpack.c.l.b16 %v187
    %v200 = vunpack.c.l.b16 %v188
    %v201 = vunpack.c.l.b16 %v189
    %v202 = vunpack.c.l.b16 %v190
    %v203 = vpack.c.b16 %v200, %v199
    %v204 = vpack.c.b16 %v202, %v201
    %vm206 = vcmask 244736
    %v208 = vsel %vm206, %v192, 0
    %vm210 = vcmask 1046528
    %v212 = vsel %vm210, %v204, 0
    %214 = vmatpush.bf16.msra.mxu0 0
    %215 = vmatpush.bf16.msra.mxu0 0
    %216 = vmatpush.bf16.msra.mxu0 0
    %217 = vmatpush.bf16.msra.mxu0 0
    %218 = vmatpush.bf16.msra.mxu0 0
    %219 = vmatpush.bf16.msra.mxu0 0
    %220 = vmatpush.bf16.msra.mxu0 %v212
    %221 = vmatpush.bf16.msra.mxu0 %v203
    %222 = vmatmul.bf16.gmra.mxu0 %v208
    %v223 = vpop.f32.mrf.mxu0
    %v224 = vadd.f32 %v194, %v223
    %v225 = vpop.f32.mrf.mxu0
    %226 = vdwg.mxu0
    %v227 = vtanh.pop %v224
    %v228 = vld [vmem:[#allocation5 + $0x88] sm:$0x1]
    %v229 = vld [vmem:[#allocation5 + $0x90] sm:$0x1]
    %v230 = vunpack.c.l.bf16 %v229
    %v231 = vunpack.c.l.bf16 %v228
    %v232 = vperm.slane %v231, 0
    %v233 = vmul.f32 %v227, %v232
    %vm234 = vcmask 80896
    %v235 = vsel %vm234, %v233, 0.0
    %236 = vadd.xlane.f32.xlu0 %v235
    %v237 = vpop.xlane.xlu0 %236
    %v238 = vperm.slane %v230, 0
    %v239 = vadd.f32 %v237, %v238
    %v240 = vld [vmem:[#allocation5 + $0x98] sm:$0x1]
    %v241 = vld [vmem:[#allocation5 + $0xa0] sm:$0x1]
    %v242 = vunpack.c.l.bf16 %v240
    %244 = vset.pattern.permute.xlu0 0
    %245 = vperm.xlu0 %244, %v239
    %v246 = vpop.permute.xlu0 %245
    %v248 = vperm.slane %v242, 0
    %v249 = vmul.f32 %v246, %v248
    %v250 = vunpack.c.l.bf16 %v241
    %v251 = vperm.slane %v250, 0
    %v252 = vadd.f32 %v249, %v251
    %v253 = vtanh.pop %v252
    %v254 = vld [vmem:[#allocation5 + $0xa8] sm:$0xf]
    %v255 = vld [vmem:[#allocation5 + $0xac] sm:$0x1]
    %v256 = vld [vmem:[#allocation5 + $0xb0] sm:$0x1]
    %v257 = vpack.c.bf16 %v253, %v253
    %v258 = vunpack.c.l.bf16 %v256
    %v259 = vperm.slane %v258, 0
    %v262 = vunpack.c.l.b16 %v254
    %v263 = vunpack.c.l.b16 %v255
    %v264 = vpack.c.b16 %v263, %v262
    %v266 = vsel %vm234, %v257, 0
    %vm268 = vcmask 1044480
    %v270 = vsel %vm268, %v264, 0
    %272 = vmatpush.bf16.msra.mxu0 0
    %273 = vmatpush.bf16.msra.mxu0 0
    %274 = vmatpush.bf16.msra.mxu0 0
    %275 = vmatpush.bf16.msra.mxu0 0
    %276 = vmatpush.bf16.msra.mxu0 0
    %277 = vmatpush.bf16.msra.mxu0 0
    %278 = vmatpush.bf16.msra.mxu0 0
    %279 = vmatpush.bf16.msra.mxu0 %v270
    %280 = vmatmul.bf16.gmra.mxu0 %v266
    %v281 = vpop.f32.mrf.mxu0
    %v282 = vadd.f32 %v259, %v281
    %v283 = vpop.f32.mrf.mxu0
    %284 = vdwg.mxu0
    %v285 = vtanh.pop %v282
    %v286 = vld [vmem:[#allocation5 + $0xb8] sm:$0xf]
    %v287 = vld [vmem:[#allocation5 + $0xbc] sm:$0xf]
    %v288 = vld [vmem:[#allocation5 + $0xc0] sm:$0xf]
    %v289 = vld [vmem:[#allocation5 + $0xc4] sm:$0x7]
    %v290 = vld [vmem:[#allocation5 + $0xc8] sm:$0x1]
    %v291 = vpack.c.bf16 %v285, %v285
    %v292 = vunpack.c.l.bf16 %v290
    %v293 = vperm.slane %v292, 0
    %v298 = vunpack.c.l.b16 %v286
    %v299 = vunpack.c.l.b16 %v287
    %v300 = vunpack.c.l.b16 %v288
    %v301 = vunpack.c.l.b16 %v289
    %v302 = vpack.c.b16 %v299, %v298
    %v303 = vpack.c.b16 %v301, %v300
    %v306 = vsel %vm206, %v291, 0
    %v309 = vsel %vm210, %v303, 0
    %311 = vmatpush.bf16.msra.mxu0 0
    %312 = vmatpush.bf16.msra.mxu0 0
    %313 = vmatpush.bf16.msra.mxu0 0
    %314 = vmatpush.bf16.msra.mxu0 0
    %315 = vmatpush.bf16.msra.mxu0 0
    %316 = vmatpush.bf16.msra.mxu0 0
    %317 = vmatpush.bf16.msra.mxu0 %v309
    %318 = vmatpush.bf16.msra.mxu0 %v302
    %319 = vmatmul.bf16.gmra.mxu0 %v306
    %v320 = vpop.f32.mrf.mxu0
    %v321 = vadd.f32 %v293, %v320
    %v322 = vpop.f32.mrf.mxu0
    %323 = vdwg.mxu0
    %v324 = vtanh.pop %v321
    %v325 = vld [vmem:[#allocation5 + $0xd0] sm:$0xf]
    %v326 = vld [vmem:[#allocation5 + $0xd4] sm:$0xf]
    %v327 = vld [vmem:[#allocation5 + $0xd8] sm:$0xf]
    %v328 = vld [vmem:[#allocation5 + $0xdc] sm:$0xf]
    %v329 = vld [vmem:[#allocation5 + $0xe0] sm:$0xf]
    %v330 = vld [vmem:[#allocation5 + $0xe4] sm:$0xf]
    %v331 = vld [vmem:[#allocation5 + $0xe8] sm:$0xf]
    %v332 = vld [vmem:[#allocation5 + $0xec] sm:$0x3]
    %v333 = vld [vmem:[#allocation5 + $0xf0] sm:$0x1]
    %v334 = vpack.c.bf16 %v324, %v324
    %v335 = vunpack.c.l.bf16 %v333
    %v336 = vperm.slane %v335, 0
    %v345 = vunpack.c.l.b16 %v325
    %v346 = vunpack.c.l.b16 %v326
    %v347 = vunpack.c.l.b16 %v327
    %v348 = vunpack.c.l.b16 %v328
    %v349 = vunpack.c.l.b16 %v329
    %v350 = vunpack.c.l.b16 %v330
    %v351 = vunpack.c.l.b16 %v331
    %v352 = vunpack.c.l.b16 %v332
    %v353 = vpack.c.b16 %v346, %v345
    %v354 = vpack.c.b16 %v348, %v347
    %v355 = vpack.c.b16 %v350, %v349
    %v356 = vpack.c.b16 %v352, %v351
    %v361 = vsel %vm165, %v334, 0
    %v364 = vsel %vm169, %v356, 0
    %366 = vmatpush.bf16.msra.mxu0 0
    %367 = vmatpush.bf16.msra.mxu0 0
    %368 = vmatpush.bf16.msra.mxu0 0
    %369 = vmatpush.bf16.msra.mxu0 0
    %370 = vmatpush.bf16.msra.mxu0 %v364
    %371 = vmatpush.bf16.msra.mxu0 %v355
    %372 = vmatpush.bf16.msra.mxu0 %v354
    %373 = vmatpush.bf16.msra.mxu0 %v353
    %374 = vmatmul.bf16.gmra.mxu0 %v361
    %v375 = vpop.f32.mrf.mxu0
    %v376 = vadd.f32 %v336, %v375
    %v377 = vpop.f32.mrf.mxu0
    %378 = vdwg.mxu0
    %v379 = vmul.f32 %v43, %v43
    %v380 = vsel %vm108, %v379, 0.0
    %381 = vadd.xlane.f32.xlu0 %v380
    %v382 = vpop.xlane.xlu0 %381
    %v383 = vmul.f32 %v376, %v376
    %v384 = vsel %vm108, %v383, 0.0
    %385 = vadd.xlane.f32.xlu0 %v384
    %v386 = vpop.xlane.xlu0 %385
    %v387 = vmul.f32 %v43, %v376
    %v388 = vsel %vm108, %v387, 0.0
    %389 = vadd.xlane.f32.xlu0 %v388
    %v390 = vpop.xlane.xlu0 %389
    %v391 = vadd.f32 %v382, %v386
    %v392 = vmul.f32 %v390, 2.0
    %v393 = vsub.f32 %v391, %v392
    %v394 = vmax.f32 %v393, 0.0
    %v395 = vrsqrt.pop %v394
    %v396 = vmul.f32 %v395, %v394
    %v397 = vmul.f32 %v396, %v395
    %v398 = vmul.f32 0.5, %v397
    %v399 = vsub.f32 1.5, %v398
    %v400 = vmul.f32 %v395, %v399
    %v401 = vmul.f32 %v394, %v400
    %vm402 = vcmp.eq.f32.partialorder %v394, inf
    %v403 = vsel %vm402, %v394, %v401
    %vm404 = vcmp.eq.f32.partialorder %v394, 0.0
    %v405 = vand.u32 %v394, 2147483648
    %v406 = vsel %vm404, %v405, %v403
    %v407 = vrsqrt.pop %v382
    %v408 = vmul.f32 %v407, %v382
    %v409 = vmul.f32 %v408, %v407
    %v410 = vmul.f32 0.5, %v409
    %v411 = vsub.f32 1.5, %v410
    %v412 = vmul.f32 %v407, %v411
    %vm413 = vweird.f32 %v382
    %vm414 = vweird.f32 %v407
    %vm415 = vmor %vm413, %vm414
    %v416 = vsel %vm415, %v407, %v412
    %v417 = vmul.f32 %v406, %v416
    %v418 = vmax.f32 %v382, 1e-16
    %v419 = vrsqrt.pop %v418
    %v420 = vmul.f32 %v419, %v418
    %v421 = vmul.f32 %v420, %v419
    %v422 = vmul.f32 0.5, %v421
    %v423 = vsub.f32 1.5, %v422
    %v424 = vmul.f32 %v419, %v423
    %vm425 = vweird.f32 %v418
    %vm426 = vweird.f32 %v419
    %vm427 = vmor %vm425, %vm426
    %v428 = vsel %vm427, %v419, %v424
    %v429 = vmul.f32 %v390, %v428
    %v430 = vmax.f32 %v386, 1e-16
    %v431 = vrsqrt.pop %v430
    %v432 = vmul.f32 %v431, %v430
    %v433 = vmul.f32 %v432, %v431
    %v434 = vmul.f32 0.5, %v433
    %v435 = vsub.f32 1.5, %v434
    %v436 = vmul.f32 %v431, %v435
    %vm437 = vweird.f32 %v430
    %vm438 = vweird.f32 %v431
    %vm439 = vmor %vm437, %vm438
    %v440 = vsel %vm439, %v431, %v436
    %v441 = vmul.f32 %v429, %v440
    %v442 = vld [vmem:[#allocation5 + $0xf8] sm:$0x3]
    %v443 = vunpack.c.l.bf16 %v442
    %v444 = vld [vmem:[#allocation5 + $0x100] sm:$0x1]
    %v445 = vunpack.c.l.bf16 %v444
    %v446 = vperm.slane %v443, 0
    %v447 = vmul.f32 %v246, %v446
    %v448 = vperm.slane %v443, 1
    %v449 = vmul.f32 %v417, %v448
    %v450 = vadd.f32 %v447, %v449
    %v451 = vperm.slane %v443, 2
    %v452 = vmul.f32 %v441, %v451
    %v453 = vadd.f32 %v450, %v452
    %v454 = vperm.slane %v445, 0
    %v455 = vadd.f32 %v453, %v454
    %v456 = vtanh.pop %v455
    %458 = vrot.lane.b32.xlu0 %v43, 10
    %v459 = vpop.permute.xlu0 %458
    %v461 = vmul.f32 %v456, %v459
    %v462 = vld [vmem:[#allocation5 + $0x108] sm:$0x1]
    %v463 = vunpack.c.l.bf16 %v462
    %v464 = vld [vmem:[#allocation5 + $0x110] sm:$0x1]
    %v465 = vunpack.c.l.bf16 %v464
    %v466 = vperm.slane %v463, 0
    %v467 = vmul.f32 %v461, %v466
    %v468 = vsel %vm234, %v467, 0.0
    %469 = vadd.xlane.f32.xlu0 %v468
    %v470 = vpop.xlane.xlu0 %469
    %v471 = vperm.slane %v465, 0
    %v472 = vadd.f32 %v470, %v471
    %v473 = vperm.slane %v463, 1
    %v474 = vmul.f32 %v461, %v473
    %v475 = vsel %vm234, %v474, 0.0
    %476 = vadd.xlane.f32.xlu0 %v475
    %v477 = vpop.xlane.xlu0 %476
    %v478 = vadd.f32 %v477, %v471
    %480 = vrot.lane.b32.xlu0 %v478, 127
    %v481 = vpop.permute.xlu0 %480
    %v483 = vmax.f32 %v472, %v481
    %v484 = vsub.f32 %v472, %v483
    %v485 = vmul.f32 %v484, 1.442695
    %v486 = vpow.pop %v485
    %488 = vrot.lane.b32.xlu0 %v483, 1
    %v489 = vpop.permute.xlu0 %488
    %v491 = vsub.f32 %v478, %v489
    %v492 = vmul.f32 %v491, 1.442695
    %v493 = vpow.pop %v492
    %495 = vrot.lane.b32.xlu0 %v493, 127
    %v496 = vpop.permute.xlu0 %495
    %v498 = vadd.f32 %v486, %v496
    %v499 = vrcp.pop %v498
    %v500 = vmul.f32 %v486, %v499
    %502 = vrot.lane.b32.xlu0 %v499, 1
    %v503 = vpop.permute.xlu0 %502
    %v505 = vmul.f32 %v493, %v503
    %vm506 = vcmask 7168
    %v507 = vsel %vm506, %v500, %v505
    %508 = vrot.lane.b32.xlu0 %v239, 118
    %v509 = vpop.permute.xlu0 %508
    %512 = vrot.lane.b32.xlu0 %v507, 121
    %v513 = vpop.permute.xlu0 %512
    %v515 = vsel %vm108, %v376, %v509
    %vm516 = vcmask 973824
    %v517 = vsel %vm516, %v515, %v417
    %vm518 = vcmask 982016
    %v519 = vsel %vm518, %v517, %v441
    %vm520 = vcmask 990208
    %v521 = vsel %vm520, %v519, %v513
    %vm522 = vcmask 1006592
    %v523 = vsel %vm522, %v521, 0.0
    %524 = vst [vmem:[#allocation7] sm:$0xff] %v523
    // Predicated region
    $region18: #{tpu_custom_call.1} parent=1 // pred_check
      _
    $region19: #{tpu_custom_call.1} parent=1 // pred_check_branch
      %526 = sbr.rel (0) target = $region21
    $region20: #{tpu_custom_call.1} parent=1 // pred_region
      %528 = vsyncadd [#allocation4], 0
      %s530 = sshll.u32 [#allocation7], 4
      %s531 = int_to_ptr.vmem [resolvable:$true] %s530
      %s532 = sshll.u32 %s2, 4
      %s533 = int_to_ptr.hbm [resolvable:$true] %s532
      %535 = dma.vmem_to_hbm [thread:$0]  %s531, 128, %s533, [#allocation4]
    $region21: #{tpu_custom_call.1} parent=1 // pred_fallthru
      _
    // Predicated region
    $region22: #{tpu_custom_call.1} parent=1 // pred_check
      _
    $region23: #{tpu_custom_call.1} parent=1 // pred_check_branch
      %537 = sbr.rel (0) target = $region25
    $region24: #{tpu_custom_call.1} parent=1 // pred_region
      %539 = dma.done [#allocation4], 128
    $region25: #{tpu_custom_call.1} parent=1 // pred_fallthru
      _
    %540 = vsyncpa [#allocation3], 1
    %541 = vsyncpa [#allocation6], 1
    %542 = vsyncpa [#allocation4], 1

// kernel: tpu_custom_call.1
$region0: #{tpu_custom_call.1}
  #allocation0 [shape = 'u32[]', space=smem, size = 0x4, offset = 0x4, fixed_abs, tag = 'smem constant byte address 0x4 - core index']
  #allocation1 [shape = 'u32[72,128]{1,0:T(1,128)}', space=vmem, size = 0x9000, scoped, tag = 'internal scratch']
  %s0 = inlined_call_operand.hbm [shape: f32[8,128], index: 0, kind: input, shape index: {}]
  %s1 = inlined_call_operand.hbm [shape: bf16[560,128], index: 1, kind: input, shape index: {}]
  %s2 = inlined_call_operand.hbm [shape: f32[8,128], index: 2, kind: output, shape index: {}]
  %s3 = sld [smem:[#allocation0]]
  $region26: #{tpu_custom_call.1} parent=0
    _
  %s5 = ssub.s32 1, %s3
  %s6 = scalar_select 0, %s5, %s3
  $region1: #{tpu_custom_call.1} parent=0
    #allocation2 [shape = 'u8[4096]{0}', space=vmem, size = 0x1000, scoped, tag = 'input window, operand 0, single buffered']
    #allocation3 [shape = 's32[1]{0}', space=sflag, size = 0x4, scoped, tag = 'scoped memory for tpu_custom_call.1']
    #allocation4 [shape = 's32[1]{0}', space=sflag, size = 0x4, scoped, tag = 'scoped memory for tpu_custom_call.1']
    #allocation5 [shape = 'u8[143360]{0}', space=vmem, size = 0x23000, scoped, tag = 'input window, operand 1, single buffered']
    #allocation6 [shape = 's32[1]{0}', space=sflag, size = 0x4, scoped, tag = 'scoped memory for tpu_custom_call.1']
    #allocation7 [shape = 'u8[4096]{0}', space=vmem, size = 0x1000, scoped, tag = 'output window, operand 0, single buffered']
    %7 = vsyncpa [#allocation3], 0
    %8 = vsyncpa [#allocation6], 0
    %9 = vsyncpa [#allocation4], 0
    // Predicated region
    $region2: #{tpu_custom_call.1} parent=1 // pred_check
      _
    $region3: #{tpu_custom_call.1} parent=1 // pred_check_branch
      %11 = sbr.rel (0) target = $region5
    $region4: #{tpu_custom_call.1} parent=1 // pred_region
      %13 = vsyncadd [#allocation3], 0
      %s15 = sshll.u32 %s0, 4
      %s16 = int_to_ptr.hbm [resolvable:$true] %s15
      %s17 = sshll.u32 [#allocation2], 4
      %s18 = int_to_ptr.vmem [resolvable:$true] %s17
      %20 = dma.hbm_to_vmem [thread:$0]  %s16, 128, %s18, [#allocation3]
    $region5: #{tpu_custom_call.1} parent=1 // pred_fallthru
      _
    // Predicated region
    $region6: #{tpu_custom_call.1} parent=1 // pred_check
      _
    $region7: #{tpu_custom_call.1} parent=1 // pred_check_branch
      %22 = sbr.rel (0) target = $region9
    $region8: #{tpu_custom_call.1} parent=1 // pred_region
      %24 = vsyncadd [#allocation6], 0
      %s25 = sshll.u32 %s1, 4
      %s26 = int_to_ptr.hbm [resolvable:$true] %s25
      %s27 = sshll.u32 [#allocation5], 4
      %s28 = int_to_ptr.vmem [resolvable:$true] %s27
      %33 = dma.hbm_to_vmem [thread:$0]  %s26, 4480, %s28, [#allocation6], 64, 64, 4
    $region9: #{tpu_custom_call.1} parent=1 // pred_fallthru
      _
    // Predicated region
    $region10: #{tpu_custom_call.1} parent=1 // pred_check
      _
    $region11: #{tpu_custom_call.1} parent=1 // pred_check_branch
      %35 = sbr.rel (0) target = $region13
    $region12: #{tpu_custom_call.1} parent=1 // pred_region
      %37 = dma.done [#allocation3], 128
    $region13: #{tpu_custom_call.1} parent=1 // pred_fallthru
      _
    // Predicated region
    $region14: #{tpu_custom_call.1} parent=1 // pred_check
      _
    $region15: #{tpu_custom_call.1} parent=1 // pred_check_branch
      %39 = sbr.rel (0) target = $region17
    $region16: #{tpu_custom_call.1} parent=1 // pred_region
      %41 = dma.done [#allocation6], 4480
    $region17: #{tpu_custom_call.1} parent=1 // pred_fallthru
      _
    %v43 = vld [vmem:[#allocation2] sm:$0xff]
    %v44 = vld [vmem:[#allocation5] sm:$0xf]
    %v45 = vld [vmem:[#allocation5 + $0x4] sm:$0xf]
    %v46 = vld [vmem:[#allocation5 + $0x8] sm:$0xf]
    %v47 = vld [vmem:[#allocation5 + $0xc] sm:$0xf]
    %v48 = vld [vmem:[#allocation5 + $0x10] sm:$0xf]
    %v49 = vld [vmem:[#allocation5 + $0x14] sm:$0xf]
    %v50 = vld [vmem:[#allocation5 + $0x18] sm:$0xf]
    %v51 = vld [vmem:[#allocation5 + $0x1c] sm:$0xf]
    %v52 = vld [vmem:[#allocation5 + $0x20] sm:$0xf]
    %v53 = vld [vmem:[#allocation5 + $0x24] sm:$0xf]
    %v54 = vld [vmem:[#allocation5 + $0x28] sm:$0xf]
    %v55 = vld [vmem:[#allocation5 + $0x2c] sm:$0xf]
    %v56 = vld [vmem:[#allocation5 + $0x30] sm:$0xf]
    %v57 = vld [vmem:[#allocation5 + $0x34] sm:$0xf]
    %v58 = vld [vmem:[#allocation5 + $0x38] sm:$0x7]
    %v59 = vld [vmem:[#allocation5 + $0x40] sm:$0x1]
    %v60 = vpack.c.bf16 %v43, %v43
    %v61 = vunpack.c.l.bf16 %v59
    %v62 = vperm.slane %v61, 0
    %v78 = vunpack.c.l.b16 %v44
    %v79 = vunpack.c.l.b16 %v45
    %v80 = vunpack.c.l.b16 %v46
    %v81 = vunpack.c.l.b16 %v47
    %v82 = vunpack.c.l.b16 %v48
    %v83 = vunpack.c.l.b16 %v49
    %v84 = vunpack.c.l.b16 %v50
    %v85 = vunpack.c.l.b16 %v51
    %v86 = vunpack.c.l.b16 %v52
    %v87 = vunpack.c.l.b16 %v53
    %v88 = vunpack.c.l.b16 %v54
    %v89 = vunpack.c.l.b16 %v55
    %v90 = vunpack.c.l.b16 %v56
    %v91 = vunpack.c.l.b16 %v57
    %v92 = vunpack.c.l.b16 %v58
    %v93 = vpack.c.b16 %v79, %v78
    %v94 = vpack.c.b16 %v81, %v80
    %v95 = vpack.c.b16 %v83, %v82
    %v96 = vpack.c.b16 %v85, %v84
    %v97 = vpack.c.b16 %v87, %v86
    %v98 = vpack.c.b16 %v89, %v88
    %v99 = vpack.c.b16 %v91, %v90
    %v100 = vpack.c.b16 %v92, %v92
    %vm108 = vcmask 965632
    %v110 = vsel %vm108, %v60, 0
    %vm112 = vcmask 1042432
    %v114 = vsel %vm112, %v100, 0
    %116 = vmatpush.bf16.msra.mxu0 %v114
    %117 = vmatpush.bf16.msra.mxu0 %v99
    %118 = vmatpush.bf16.msra.mxu0 %v98
    %119 = vmatpush.bf16.msra.mxu0 %v97
    %120 = vmatpush.bf16.msra.mxu0 %v96
    %121 = vmatpush.bf16.msra.mxu0 %v95
    %122 = vmatpush.bf16.msra.mxu0 %v94
    %123 = vmatpush.bf16.msra.mxu0 %v93
    %124 = vmatmul.bf16.gmra.mxu0 %v110
    %v125 = vpop.f32.mrf.mxu0
    %v126 = vadd.f32 %v62, %v125
    %v127 = vpop.f32.mrf.mxu0
    %128 = vdwg.mxu0
    %v129 = vtanh.pop %v126
    %v130 = vld [vmem:[#allocation5 + $0x48] sm:$0xf]
    %v131 = vld [vmem:[#allocation5 + $0x4c] sm:$0xf]
    %v132 = vld [vmem:[#allocation5 + $0x50] sm:$0xf]
    %v133 = vld [vmem:[#allocation5 + $0x54] sm:$0xf]
    %v134 = vld [vmem:[#allocation5 + $0x58] sm:$0xf]
    %v135 = vld [vmem:[#allocation5 + $0x5c] sm:$0xf]
    %v136 = vld [vmem:[#allocation5 + $0x60] sm:$0xf]
    %v137 = vld [vmem:[#allocation5 + $0x64] sm:$0x3]
    %v138 = vld [vmem:[#allocation5 + $0x68] sm:$0x1]
    %v139 = vpack.c.bf16 %v129, %v129
    %v140 = vunpack.c.l.bf16 %v138
    %v141 = vperm.slane %v140, 0
    %v150 = vunpack.c.l.b16 %v130
    %v151 = vunpack.c.l.b16 %v131
    %v152 = vunpack.c.l.b16 %v132
    %v153 = vunpack.c.l.b16 %v133
    %v154 = vunpack.c.l.b16 %v134
    %v155 = vunpack.c.l.b16 %v135
    %v156 = vunpack.c.l.b16 %v136
    %v157 = vunpack.c.l.b16 %v137
    %v158 = vpack.c.b16 %v151, %v150
    %v159 = vpack.c.b16 %v153, %v152
    %v160 = vpack.c.b16 %v155, %v154
    %v161 = vpack.c.b16 %v157, %v156
    %vm165 = vcmask 490496
    %v167 = vsel %vm165, %v139, 0
    %vm169 = vcmask 1045504
    %v171 = vsel %vm169, %v161, 0
    %173 = vmatpush.bf16.msra.mxu0 0
    %174 = vmatpush.bf16.msra.mxu0 0
    %175 = vmatpush.bf16.msra.mxu0 0
    %176 = vmatpush.bf16.msra.mxu0 0
    %177 = vmatpush.bf16.msra.mxu0 %v171
    %178 = vmatpush.bf16.msra.mxu0 %v160
    %179 = vmatpush.bf16.msra.mxu0 %v159
    %180 = vmatpush.bf16.msra.mxu0 %v158
    %181 = vmatmul.bf16.gmra.mxu0 %v167
    %v182 = vpop.f32.mrf.mxu0
    %v183 = vadd.f32 %v141, %v182
    %v184 = vpop.f32.mrf.mxu0
    %185 = vdwg.mxu0
    %v186 = vtanh.pop %v183
    %v187 = vld [vmem:[#allocation5 + $0x70] sm:$0xf]
    %v188 = vld [vmem:[#allocation5 + $0x74] sm:$0xf]
    %v189 = vld [vmem:[#allocation5 + $0x78] sm:$0xf]
    %v190 = vld [vmem:[#allocation5 + $0x7c] sm:$0x7]
    %v191 = vld [vmem:[#allocation5 + $0x80] sm:$0x1]
    %v192 = vpack.c.bf16 %v186, %v186
    %v193 = vunpack.c.l.bf16 %v191
    %v194 = vperm.slane %v193, 0
    %v199 = vunpack.c.l.b16 %v187
    %v200 = vunpack.c.l.b16 %v188
    %v201 = vunpack.c.l.b16 %v189
    %v202 = vunpack.c.l.b16 %v190
    %v203 = vpack.c.b16 %v200, %v199
    %v204 = vpack.c.b16 %v202, %v201
    %vm206 = vcmask 244736
    %v208 = vsel %vm206, %v192, 0
    %vm210 = vcmask 1046528
    %v212 = vsel %vm210, %v204, 0
    %214 = vmatpush.bf16.msra.mxu0 0
    %215 = vmatpush.bf16.msra.mxu0 0
    %216 = vmatpush.bf16.msra.mxu0 0
    %217 = vmatpush.bf16.msra.mxu0 0
    %218 = vmatpush.bf16.msra.mxu0 0
    %219 = vmatpush.bf16.msra.mxu0 0
    %220 = vmatpush.bf16.msra.mxu0 %v212
    %221 = vmatpush.bf16.msra.mxu0 %v203
    %222 = vmatmul.bf16.gmra.mxu0 %v208
    %v223 = vpop.f32.mrf.mxu0
    %v224 = vadd.f32 %v194, %v223
    %v225 = vpop.f32.mrf.mxu0
    %226 = vdwg.mxu0
    %v227 = vtanh.pop %v224
    %v228 = vld [vmem:[#allocation5 + $0x88] sm:$0x1]
    %v229 = vld [vmem:[#allocation5 + $0x90] sm:$0x1]
    %v230 = vunpack.c.l.bf16 %v229
    %v231 = vunpack.c.l.bf16 %v228
    %v232 = vperm.slane %v231, 0
    %v233 = vmul.f32 %v227, %v232
    %vm234 = vcmask 80896
    %v235 = vsel %vm234, %v233, 0.0
    %236 = vadd.xlane.f32.xlu0 %v235
    %v237 = vpop.xlane.xlu0 %236
    %v238 = vperm.slane %v230, 0
    %v239 = vadd.f32 %v237, %v238
    %v240 = vld [vmem:[#allocation5 + $0x98] sm:$0x1]
    %v241 = vld [vmem:[#allocation5 + $0xa0] sm:$0x1]
    %v242 = vunpack.c.l.bf16 %v240
    %244 = vset.pattern.permute.xlu0 0
    %245 = vperm.xlu0 %244, %v239
    %v246 = vpop.permute.xlu0 %245
    %v248 = vperm.slane %v242, 0
    %v249 = vmul.f32 %v246, %v248
    %v250 = vunpack.c.l.bf16 %v241
    %v251 = vperm.slane %v250, 0
    %v252 = vadd.f32 %v249, %v251
    %v253 = vtanh.pop %v252
    %v254 = vld [vmem:[#allocation5 + $0xa8] sm:$0xf]
    %v255 = vld [vmem:[#allocation5 + $0xac] sm:$0x1]
    %v256 = vld [vmem:[#allocation5 + $0xb0] sm:$0x1]
    %v257 = vpack.c.bf16 %v253, %v253
    %v258 = vunpack.c.l.bf16 %v256
    %v259 = vperm.slane %v258, 0
    %v262 = vunpack.c.l.b16 %v254
    %v263 = vunpack.c.l.b16 %v255
    %v264 = vpack.c.b16 %v263, %v262
    %v266 = vsel %vm234, %v257, 0
    %vm268 = vcmask 1044480
    %v270 = vsel %vm268, %v264, 0
    %272 = vmatpush.bf16.msra.mxu0 0
    %273 = vmatpush.bf16.msra.mxu0 0
    %274 = vmatpush.bf16.msra.mxu0 0
    %275 = vmatpush.bf16.msra.mxu0 0
    %276 = vmatpush.bf16.msra.mxu0 0
    %277 = vmatpush.bf16.msra.mxu0 0
    %278 = vmatpush.bf16.msra.mxu0 0
    %279 = vmatpush.bf16.msra.mxu0 %v270
    %280 = vmatmul.bf16.gmra.mxu0 %v266
    %v281 = vpop.f32.mrf.mxu0
    %v282 = vadd.f32 %v259, %v281
    %v283 = vpop.f32.mrf.mxu0
    %284 = vdwg.mxu0
    %v285 = vtanh.pop %v282
    %v286 = vld [vmem:[#allocation5 + $0xb8] sm:$0xf]
    %v287 = vld [vmem:[#allocation5 + $0xbc] sm:$0xf]
    %v288 = vld [vmem:[#allocation5 + $0xc0] sm:$0xf]
    %v289 = vld [vmem:[#allocation5 + $0xc4] sm:$0x7]
    %v290 = vld [vmem:[#allocation5 + $0xc8] sm:$0x1]
    %v291 = vpack.c.bf16 %v285, %v285
    %v292 = vunpack.c.l.bf16 %v290
    %v293 = vperm.slane %v292, 0
    %v298 = vunpack.c.l.b16 %v286
    %v299 = vunpack.c.l.b16 %v287
    %v300 = vunpack.c.l.b16 %v288
    %v301 = vunpack.c.l.b16 %v289
    %v302 = vpack.c.b16 %v299, %v298
    %v303 = vpack.c.b16 %v301, %v300
    %v306 = vsel %vm206, %v291, 0
    %v309 = vsel %vm210, %v303, 0
    %311 = vmatpush.bf16.msra.mxu0 0
    %312 = vmatpush.bf16.msra.mxu0 0
    %313 = vmatpush.bf16.msra.mxu0 0
    %314 = vmatpush.bf16.msra.mxu0 0
    %315 = vmatpush.bf16.msra.mxu0 0
    %316 = vmatpush.bf16.msra.mxu0 0
    %317 = vmatpush.bf16.msra.mxu0 %v309
    %318 = vmatpush.bf16.msra.mxu0 %v302
    %319 = vmatmul.bf16.gmra.mxu0 %v306
    %v320 = vpop.f32.mrf.mxu0
    %v321 = vadd.f32 %v293, %v320
    %v322 = vpop.f32.mrf.mxu0
    %323 = vdwg.mxu0
    %v324 = vtanh.pop %v321
    %v325 = vld [vmem:[#allocation5 + $0xd0] sm:$0xf]
    %v326 = vld [vmem:[#allocation5 + $0xd4] sm:$0xf]
    %v327 = vld [vmem:[#allocation5 + $0xd8] sm:$0xf]
    %v328 = vld [vmem:[#allocation5 + $0xdc] sm:$0xf]
    %v329 = vld [vmem:[#allocation5 + $0xe0] sm:$0xf]
    %v330 = vld [vmem:[#allocation5 + $0xe4] sm:$0xf]
    %v331 = vld [vmem:[#allocation5 + $0xe8] sm:$0xf]
    %v332 = vld [vmem:[#allocation5 + $0xec] sm:$0x3]
    %v333 = vld [vmem:[#allocation5 + $0xf0] sm:$0x1]
    %v334 = vpack.c.bf16 %v324, %v324
    %v335 = vunpack.c.l.bf16 %v333
    %v336 = vperm.slane %v335, 0
    %v345 = vunpack.c.l.b16 %v325
    %v346 = vunpack.c.l.b16 %v326
    %v347 = vunpack.c.l.b16 %v327
    %v348 = vunpack.c.l.b16 %v328
    %v349 = vunpack.c.l.b16 %v329
    %v350 = vunpack.c.l.b16 %v330
    %v351 = vunpack.c.l.b16 %v331
    %v352 = vunpack.c.l.b16 %v332
    %v353 = vpack.c.b16 %v346, %v345
    %v354 = vpack.c.b16 %v348, %v347
    %v355 = vpack.c.b16 %v350, %v349
    %v356 = vpack.c.b16 %v352, %v351
    %v361 = vsel %vm165, %v334, 0
    %v364 = vsel %vm169, %v356, 0
    %366 = vmatpush.bf16.msra.mxu0 0
    %367 = vmatpush.bf16.msra.mxu0 0
    %368 = vmatpush.bf16.msra.mxu0 0
    %369 = vmatpush.bf16.msra.mxu0 0
    %370 = vmatpush.bf16.msra.mxu0 %v364
    %371 = vmatpush.bf16.msra.mxu0 %v355
    %372 = vmatpush.bf16.msra.mxu0 %v354
    %373 = vmatpush.bf16.msra.mxu0 %v353
    %374 = vmatmul.bf16.gmra.mxu0 %v361
    %v375 = vpop.f32.mrf.mxu0
    %v376 = vadd.f32 %v336, %v375
    %v377 = vpop.f32.mrf.mxu0
    %378 = vdwg.mxu0
    %v379 = vmul.f32 %v43, %v43
    %v380 = vsel %vm108, %v379, 0.0
    %381 = vadd.xlane.f32.xlu0 %v380
    %v382 = vpop.xlane.xlu0 %381
    %v383 = vmul.f32 %v376, %v376
    %v384 = vsel %vm108, %v383, 0.0
    %385 = vadd.xlane.f32.xlu0 %v384
    %v386 = vpop.xlane.xlu0 %385
    %v387 = vmul.f32 %v43, %v376
    %v388 = vsel %vm108, %v387, 0.0
    %389 = vadd.xlane.f32.xlu0 %v388
    %v390 = vpop.xlane.xlu0 %389
    %v391 = vadd.f32 %v382, %v386
    %v392 = vmul.f32 %v390, 2.0
    %v393 = vsub.f32 %v391, %v392
    %v394 = vmax.f32 %v393, 0.0
    %v395 = vrsqrt.pop %v394
    %v396 = vmul.f32 %v395, %v394
    %v397 = vmul.f32 %v396, %v395
    %v398 = vmul.f32 0.5, %v397
    %v399 = vsub.f32 1.5, %v398
    %v400 = vmul.f32 %v395, %v399
    %v401 = vmul.f32 %v394, %v400
    %vm402 = vcmp.eq.f32.partialorder %v394, inf
    %v403 = vsel %vm402, %v394, %v401
    %vm404 = vcmp.eq.f32.partialorder %v394, 0.0
    %v405 = vand.u32 %v394, 2147483648
    %v406 = vsel %vm404, %v405, %v403
    %v407 = vrsqrt.pop %v382
    %v408 = vmul.f32 %v407, %v382
    %v409 = vmul.f32 %v408, %v407
    %v410 = vmul.f32 0.5, %v409
    %v411 = vsub.f32 1.5, %v410
    %v412 = vmul.f32 %v407, %v411
    %vm413 = vweird.f32 %v382
    %vm414 = vweird.f32 %v407
    %vm415 = vmor %vm413, %vm414
    %v416 = vsel %vm415, %v407, %v412
    %v417 = vmul.f32 %v406, %v416
    %v418 = vmax.f32 %v382, 1e-16
    %v419 = vrsqrt.pop %v418
    %v420 = vmul.f32 %v419, %v418
    %v421 = vmul.f32 %v420, %v419
    %v422 = vmul.f32 0.5, %v421
    %v423 = vsub.f32 1.5, %v422
    %v424 = vmul.f32 %v419, %v423
    %vm425 = vweird.f32 %v418
    %vm426 = vweird.f32 %v419
    %vm427 = vmor %vm425, %vm426
    %v428 = vsel %vm427, %v419, %v424
    %v429 = vmul.f32 %v390, %v428
    %v430 = vmax.f32 %v386, 1e-16
    %v431 = vrsqrt.pop %v430
    %v432 = vmul.f32 %v431, %v430
    %v433 = vmul.f32 %v432, %v431
    %v434 = vmul.f32 0.5, %v433
    %v435 = vsub.f32 1.5, %v434
    %v436 = vmul.f32 %v431, %v435
    %vm437 = vweird.f32 %v430
    %vm438 = vweird.f32 %v431
    %vm439 = vmor %vm437, %vm438
    %v440 = vsel %vm439, %v431, %v436
    %v441 = vmul.f32 %v429, %v440
    %v442 = vld [vmem:[#allocation5 + $0xf8] sm:$0x3]
    %v443 = vunpack.c.l.bf16 %v442
    %v444 = vld [vmem:[#allocation5 + $0x100] sm:$0x1]
    %v445 = vunpack.c.l.bf16 %v444
    %v446 = vperm.slane %v443, 0
    %v447 = vmul.f32 %v246, %v446
    %v448 = vperm.slane %v443, 1
    %v449 = vmul.f32 %v417, %v448
    %v450 = vadd.f32 %v447, %v449
    %v451 = vperm.slane %v443, 2
    %v452 = vmul.f32 %v441, %v451
    %v453 = vadd.f32 %v450, %v452
    %v454 = vperm.slane %v445, 0
    %v455 = vadd.f32 %v453, %v454
    %v456 = vtanh.pop %v455
    %458 = vrot.lane.b32.xlu0 %v43, 10
    %v459 = vpop.permute.xlu0 %458
    %v461 = vmul.f32 %v456, %v459
    %v462 = vld [vmem:[#allocation5 + $0x108] sm:$0x1]
    %v463 = vunpack.c.l.bf16 %v462
    %v464 = vld [vmem:[#allocation5 + $0x110] sm:$0x1]
    %v465 = vunpack.c.l.bf16 %v464
    %v466 = vperm.slane %v463, 0
    %v467 = vmul.f32 %v461, %v466
    %v468 = vsel %vm234, %v467, 0.0
    %469 = vadd.xlane.f32.xlu0 %v468
    %v470 = vpop.xlane.xlu0 %469
    %v471 = vperm.slane %v465, 0
    %v472 = vadd.f32 %v470, %v471
    %v473 = vperm.slane %v463, 1
    %v474 = vmul.f32 %v461, %v473
    %v475 = vsel %vm234, %v474, 0.0
    %476 = vadd.xlane.f32.xlu0 %v475
    %v477 = vpop.xlane.xlu0 %476
    %v478 = vadd.f32 %v477, %v471
    %480 = vrot.lane.b32.xlu0 %v478, 127
    %v481 = vpop.permute.xlu0 %480
    %v483 = vmax.f32 %v472, %v481
    %v484 = vsub.f32 %v472, %v483
    %v485 = vmul.f32 %v484, 1.442695
    %v486 = vpow.pop %v485
    %488 = vrot.lane.b32.xlu0 %v483, 1
    %v489 = vpop.permute.xlu0 %488
    %v491 = vsub.f32 %v478, %v489
    %v492 = vmul.f32 %v491, 1.442695
    %v493 = vpow.pop %v492
    %495 = vrot.lane.b32.xlu0 %v493, 127
    %v496 = vpop.permute.xlu0 %495
    %v498 = vadd.f32 %v486, %v496
    %v499 = vrcp.pop %v498
    %v500 = vmul.f32 %v486, %v499
    %502 = vrot.lane.b32.xlu0 %v499, 1
    %v503 = vpop.permute.xlu0 %502
    %v505 = vmul.f32 %v493, %v503
    %vm506 = vcmask 7168
    %v507 = vsel %vm506, %v500, %v505
    %508 = vrot.lane.b32.xlu0 %v239, 118
    %v509 = vpop.permute.xlu0 %508
    %512 = vrot.lane.b32.xlu0 %v507, 121
    %v513 = vpop.permute.xlu0 %512
    %v515 = vsel %vm108, %v376, %v509
    %vm516 = vcmask 973824
    %v517 = vsel %vm516, %v515, %v417
    %vm518 = vcmask 982016
    %v519 = vsel %vm518, %v517, %v441
    %vm520 = vcmask 990208
    %v521 = vsel %vm520, %v519, %v513
    %vm522 = vcmask 1006592
    %v523 = vsel %vm522, %v521, 0.0
    %524 = vst [vmem:[#allocation7] sm:$0xff] %v523
    // Predicated region
    $region18: #{tpu_custom_call.1} parent=1 // pred_check
      _
    $region19: #{tpu_custom_call.1} parent=1 // pred_check_branch
      %526 = sbr.rel (0) target = $region21
    $region20: #{tpu_custom_call.1} parent=1 // pred_region
      %528 = vsyncadd [#allocation4], 0
      %s530 = sshll.u32 [#allocation7], 4
      %s531 = int_to_ptr.vmem [resolvable:$true] %s530
      %s532 = sshll.u32 %s2, 4
      %s533 = int_to_ptr.hbm [resolvable:$true] %s532
      %535 = dma.vmem_to_hbm [thread:$0]  %s531, 128, %s533, [#allocation4]
    $region21: #{tpu_custom_call.1} parent=1 // pred_fallthru
      _
    // Predicated region
    $region22: #{tpu_custom_call.1} parent=1 // pred_check
      _
    $region23: #{tpu_custom_call.1} parent=1 // pred_check_branch
      %537 = sbr.rel (0) target = $region25
    $region24: #{tpu_custom_call.1} parent=1 // pred_region
      %539 = dma.done [#allocation4], 128
    $region25: #{tpu_custom_call.1} parent=1 // pred_fallthru
      _
    %540 = vsyncpa [#allocation3], 1
    %541 = vsyncpa [#allocation6], 1
    %542 = vsyncpa [#allocation4], 1

</llo_original>
